<compile_context>
chip_gen: v5e
topology: v5e:2x2
jax: 0.10.0
libtpu: 0.0.40
codegen_flags: <defaults>
</compile_context>

<pallas_src>
import math
import numpy as np
import jax
import jax.numpy as jnp
from jax import lax
from jax.experimental import pallas as pl
from jax.experimental.pallas import tpu as pltpu

EPS = 1e-5  # PyTorch BatchNorm2d default eps


# ----------------------------------------------------------------------------
# In-kernel Bottleneck block.
# Data layout: channels on sublanes, flattened per-image spatial on lanes.
#   x        : (Cin, M)  f32 activations (M = H*W)
#   slab_ref : (6*planes, maxW+1) f32 packed parameter slab:
#                rows [0,p)   : w1f (p, Cin)                 | b1     in col maxW
#                rows [p,2p)  : w2cat (p, 9p)                | b2     in col maxW
#                rows [2p,6p) : w3f (4p, p), wdf (4p, Cin)@p | b3+bd  in col maxW
#   s_ref    : (9, M, Mo) bf16 0/1 selection matrices; column mo of tap t picks
#              the circularly-wrapped, stride-strided source pixel.  Tap 4
#              (centre) equals the plain stride subsample (stride*oh < H), so it
#              doubles as the downsample branch's spatial subsample.
#   g_ref    : (9*planes, Mo) f32 VMEM scratch for the stacked tap gathers.
# ----------------------------------------------------------------------------
def _bottleneck_block(x, slab_ref, s_ref, g_ref, meta):
    p = meta["planes"]
    c = meta["cin"]
    bcol = meta["maxw"]
    bf16 = jnp.bfloat16

    def dot(a, b):
        return jnp.dot(a, b, preferred_element_type=jnp.float32)

    # Static slices of the packed slab (weights -> bf16 for the MXU).
    w1 = slab_ref[0:p, 0:c].astype(bf16)                    # (p, Cin)
    b1 = slab_ref[0:p, bcol:bcol + 1]                       # (p, 1)  f32
    w2cat = slab_ref[p:2 * p, 0:9 * p].astype(bf16)         # (p, 9p)
    b2 = slab_ref[p:2 * p, bcol:bcol + 1]                   # (p, 1)  f32
    w3 = slab_ref[2 * p:6 * p, 0:p].astype(bf16)            # (4p, p)
    wd = slab_ref[2 * p:6 * p, p:p + c].astype(bf16)        # (4p, Cin)
    b3d = slab_ref[2 * p:6 * p, bcol:bcol + 1]              # (4p, 1) = b3 + bd

    xb = x.astype(bf16)

    # conv1 (1x1) + bn1 + relu
    h1 = jnp.maximum(dot(w1, xb) + b1, 0.0)                 # (p, M) f32
    h1b = h1.astype(bf16)

    # conv2 (3x3 circular pad, stride) + bn2 + relu:
    # 9 INDEPENDENT gather matmuls into sublane slices of the scratch (they
    # pipeline back-to-back on the MXU), then one K=9*planes contraction.
    # No im2col tensor ever exists in HBM.
    for t in range(9):
        g_ref[t * p:(t + 1) * p, :] = dot(h1b, s_ref[t])    # (p, Mo)
    gcat = g_ref[...].astype(bf16)                          # (9p, Mo)
    h2 = jnp.maximum(dot(w2cat, gcat) + b2, 0.0)            # (p, Mo) f32

    # downsample branch: stride subsample (= centre tap) then 1x1; its BN shift
    # is already folded into b3d.
    xsb = dot(xb, s_ref[4]).astype(bf16)                    # (Cin, Mo)

    # conv3 (1x1) + bn3 + downsample residual; endRelu=False for these blocks.
    return dot(w3, h2.astype(bf16)) + dot(wd, xsb) + b3d    # (4p, Mo) f32


def _const_spec(arr):
    """Full-array block, same block at every grid step (revisited, not re-DMA'd)."""
    nd = arr.ndim
    return pl.BlockSpec(arr.shape, lambda g, _nd=nd: (0,) * _nd)


def _tap_selection_mats(H, W, stride):
    """(9, H*W, Ho*Wo) bf16 0/1 matrices: tap (di,dj) of a circular-padded 3x3
    conv with the given stride selects source ((s*oh+di-1)%H, (s*ow+dj-1)%W).
    0/1 values are exact in bf16."""
    Ho = (H - 1) // stride + 1
    Wo = (W - 1) // stride + 1
    S = np.zeros((9, H * W, Ho * Wo), np.float32)
    for di in range(3):
        for dj in range(3):
            t = di * 3 + dj
            for oh in range(Ho):
                sh = (stride * oh + di - 1) % H
                for ow in range(Wo):
                    sw = (stride * ow + dj - 1) % W
                    S[t, sh * W + sw, oh * Wo + ow] = 1.0
    return jnp.asarray(S, dtype=jnp.bfloat16)


# ----------------------------------------------------------------------------
# One pallas_call for the whole chain of Bottleneck blocks.
# ----------------------------------------------------------------------------
def fused_bottleneck_chain(x_nchw, blocks):
    N, C, H, W = x_nchw.shape
    # At most 2 grid steps: keeps both v7x TensorCores busy; on single-TC
    # v5e/v6e the second step costs ~0.35us.  Each step processes ips images.
    G = 2 if (N >= 2 and N % 2 == 0) else 1
    ips = N // G

    operands = [x_nchw.reshape(N, C, H * W).astype(jnp.float32)]
    in_specs = [pl.BlockSpec((ips, C, H * W), lambda g: (g, 0, 0))]
    scratch_shapes = []
    metas = []

    cin, h, w = C, H, W
    for p in blocks:
        planes, stride = p["planes"], p["stride"]
        assert p["cin"] == cin, (p["cin"], cin)
        ho = (h - 1) // stride + 1
        wo = (w - 1) // stride + 1
        s_all = _tap_selection_mats(h, w, stride)     # (9, h*w, ho*wo) bf16
        # TODO(synk): the dense selection-matrix gather scales as 9*(H*W)*(Ho*Wo)
        # and would exhaust v7x VMEM at large resolutions; switch to an
        # int32-index gather (jnp.take) before reusing this kernel there.
        operands += [p["slab"], s_all]
        in_specs += [_const_spec(p["slab"]), _const_spec(s_all)]
        scratch_shapes.append(pltpu.VMEM((9 * planes, ho * wo), jnp.float32))
        metas.append(dict(planes=planes, cin=cin, maxw=p["maxw"]))
        cin, h, w = 4 * planes, ho, wo

    n_blocks = len(blocks)
    out_shape = jax.ShapeDtypeStruct((N, cin, h * w), jnp.float32)
    out_spec = pl.BlockSpec((ips, cin, h * w), lambda g: (g, 0, 0))

    def kernel(*refs):
        x_ref = refs[0]
        o_ref = refs[1 + 2 * n_blocks]
        g_refs = refs[2 + 2 * n_blocks:]
        for i in range(ips):                         # unrolled over images
            y = x_ref[i]                             # (C, H*W) f32
            for b in range(n_blocks):
                y = _bottleneck_block(y, refs[1 + 2 * b], refs[2 + 2 * b],
                                      g_refs[b], metas[b])
            o_ref[i] = y

    out = pl.pallas_call(
        kernel,
        out_shape=out_shape,
        grid=(G,),
        in_specs=in_specs,
        out_specs=out_spec,
        scratch_shapes=scratch_shapes,
        compiler_params=pltpu.CompilerParams(
            dimension_semantics=("parallel",),
            vmem_limit_bytes=32 * 1024 * 1024,
        ),
    )(*operands)
    return out.reshape(N, cin, h, w)


def rev_resnet_forward(x_dict, params):
    """RevResNet.forward: layer4 then layer3, blocks applied in reverse order,
    fused into a single pallas_call per input feature map."""
    blocks = []
    for layer in (params["layer4"], params["layer3"]):
        for i in range(len(layer) - 1, -1, -1):
            blocks.append(layer[i])
    # TODO(synk): multiple_stride>1 key-splitting path and the no-downsample
    # identity residual are not wired (this configuration never uses them).
    out = {k: fused_bottleneck_chain(v, blocks) for k, v in x_dict.items()}
    return {"x": out}


# ----------------------------------------------------------------------------
# Deterministic parameter construction (matching the module's __init__ scheme)
# ----------------------------------------------------------------------------
def _kaiming_conv(key, cout, cin, k):
    std = math.sqrt(2.0 / (cout * k * k))  # kaiming_normal_, mode='fan_out', relu
    return std * jax.random.normal(key, (cout, cin, k, k), dtype=jnp.float32)


def _bn_affine(c):
    gamma = jnp.ones((c,), jnp.float32)   # nn.init.constant_(weight, 1)
    beta = jnp.zeros((c,), jnp.float32)   # nn.init.constant_(bias, 0)
    mean = jnp.zeros((c,), jnp.float32)   # running_mean
    var = jnp.ones((c,), jnp.float32)     # running_var
    scale = gamma / jnp.sqrt(var + EPS)
    shift = beta - mean * scale
    return scale, shift


def make_bottleneck_params(key, inplanes, planes, stride, expansion=4):
    k1, k2, k3, kd = jax.random.split(key, 4)
    w1 = _kaiming_conv(k1, planes, inplanes, 1)
    w2 = _kaiming_conv(k2, planes, planes, 3)
    w3 = _kaiming_conv(k3, planes * expansion, planes, 1)
    wd = _kaiming_conv(kd, planes * expansion, inplanes, 1)
    s1, b1 = _bn_affine(planes)
    s2, b2 = _bn_affine(planes)
    s3, b3 = _bn_affine(planes * expansion)
    sd, bd = _bn_affine(planes * expansion)

    # GEMM layouts with the BatchNorm scale folded into the weights.
    w1f = w1[:, :, 0, 0] * s1[:, None]                              # (p, Cin)
    w2taps = (jnp.transpose(w2, (2, 3, 0, 1)).reshape(9, planes, planes)
              * s2[None, :, None])                                  # (9, p, p)
    w2cat = jnp.transpose(w2taps, (1, 0, 2)).reshape(planes, 9 * planes)
    w3f = w3[:, :, 0, 0] * s3[:, None]                              # (4p, p)
    wdf = wd[:, :, 0, 0] * sd[:, None]                              # (4p, Cin)

    # One packed f32 slab per block: weights at lane 0 of each row group, the
    # (combined) BN shift in the last column.
    maxw = max(inplanes, 9 * planes, planes + inplanes)
    slab = jnp.zeros((6 * planes, maxw + 1), jnp.float32)
    slab = slab.at[0:planes, 0:inplanes].set(w1f)
    slab = slab.at[0:planes, maxw].set(b1)
    slab = slab.at[planes:2 * planes, 0:9 * planes].set(w2cat)
    slab = slab.at[planes:2 * planes, maxw].set(b2)
    slab = slab.at[2 * planes:6 * planes, 0:planes].set(w3f)
    slab = slab.at[2 * planes:6 * planes, planes:planes + inplanes].set(wdf)
    slab = slab.at[2 * planes:6 * planes, maxw].set(b3 + bd)

    return dict(
        stride=stride, planes=planes, cin=inplanes, maxw=maxw, slab=slab,
        # raw tensors for the lax.conv reference check
        w1=w1, w2=w2, w3=w3, wd=wd,
        s1=s1, b1=b1, s2=s2, b2=b2, s3=s3, b3=b3, sd=sd, bd=bd,
    )


# ----------------------------------------------------------------------------
# Pure-JAX reference (lax.conv) for the correctness sanity check
# ----------------------------------------------------------------------------
def _conv_ref(x, w, stride, circular=False):
    if circular:
        x = jnp.pad(x, ((0, 0), (0, 0), (1, 1), (1, 1)), mode="wrap")
    return lax.conv_general_dilated(
        x, w, (stride, stride), "VALID",
        dimension_numbers=("NCHW", "OIHW", "NCHW"),
        precision=lax.Precision.HIGHEST)


def _bn_ref(y, s, b):
    return y * s[None, :, None, None] + b[None, :, None, None]


def bottleneck_ref(x, p, stride):
    ident = x
    h = jax.nn.relu(_bn_ref(_conv_ref(x, p["w1"], 1), p["s1"], p["b1"]))
    h = jax.nn.relu(_bn_ref(_conv_ref(h, p["w2"], stride, circular=True), p["s2"], p["b2"]))
    h = _bn_ref(_conv_ref(h, p["w3"], 1), p["s3"], p["b3"])
    idd = _bn_ref(_conv_ref(ident, p["wd"], stride), p["sd"], p["bd"])
    return h + idd  # endRelu=False


def rev_resnet_ref(x, params):
    for layer in (params["layer4"], params["layer3"]):
        for i in range(len(layer) - 1, -1, -1):
            x = bottleneck_ref(x, layer[i], layer[i]["stride"])
    return x


# ----------------------------------------------------------------------------
if __name__ == "__main__":
    key = jax.random.PRNGKey(0)
    k_in, k3, k4 = jax.random.split(key, 3)

    # chan=[4,4,8,4], Bottleneck.expansion=4, layers=[1,1,1,1], stride-2 layers.
    chan = [4, 4, 8, 4]
    expansion = 4
    params = {
        # layer4[0]: Bottleneck(inplanes=chan[2]*4=32, planes=chan[3]=4, stride=2, downsample)
        "layer4": [make_bottleneck_params(k4, chan[2] * expansion, chan[3], 2, expansion)],
        # layer3[0]: Bottleneck(inplanes=chan[1]*4=16, planes=chan[2]=8, stride=2, downsample)
        "layer3": [make_bottleneck_params(k3, chan[1] * expansion, chan[2], 2, expansion)],
    }

    # RevResNet input: the feature map feeding layer4 -> (N, chan[2]*4, H, W),
    # NCHW, wrapped in the {'00': tensor} dict that Bottleneck.forward expects.
    x = jax.random.normal(k_in, (2, chan[2] * expansion, 16, 16), dtype=jnp.float32)

    out_dict = rev_resnet_forward({"00": x}, params)
    out = jax.block_until_ready(out_dict["x"]["00"])
    assert out.shape == (2, chan[2] * expansion, 4, 4), out.shape

    ref = jax.block_until_ready(rev_resnet_ref(x, params))
    # bf16 matmul inputs with f32 accumulation -> leave ~1e-2 of numerical
    # headroom; any layout/fusion bug would show up as an O(1) error.
    rel_err = float(jnp.max(jnp.abs(out - ref)) / (jnp.max(jnp.abs(ref)) + 1e-6))
    assert rel_err < 2e-2, f"mismatch vs reference: rel_err={rel_err}"

    print("KERNEL_OK")
</pallas_src>

<mosaic_0001>
module attributes {stable_mosaic.version = 11 : i64} {
  func.func @kernel(%arg0: i32, %arg1: memref<1x32x256xf32, #tpu.memory_space<vmem>>, %arg2: memref<24x37xf32, #tpu.memory_space<vmem>>, %arg3: memref<9x256x64xbf16, #tpu.memory_space<vmem>>, %arg4: memref<48x73xf32, #tpu.memory_space<vmem>>, %arg5: memref<9x64x16xbf16, #tpu.memory_space<vmem>>, %arg6: memref<1x32x16xf32, #tpu.memory_space<vmem>>, %arg7: memref<36x64xf32, #tpu.memory_space<vmem>>, %arg8: memref<72x16xf32, #tpu.memory_space<vmem>>) attributes {dimension_semantics = [#tpu.dimension_semantics<parallel>], iteration_bounds = array<i64: 2>, scalar_prefetch = 0 : i64, scratch_operands = 2 : i64, tpu.core_type = #tpu.core_type<tc>, window_params = [{transform_indices = @transform_0, window_bounds = array<i64: 1, 32, 256>}, {pipeline_mode = #tpu.pipeline_mode<synchronous>, transform_indices = @transform_1, window_bounds = array<i64: 24, 37>}, {pipeline_mode = #tpu.pipeline_mode<synchronous>, transform_indices = @transform_2, window_bounds = array<i64: 9, 256, 64>}, {pipeline_mode = #tpu.pipeline_mode<synchronous>, transform_indices = @transform_3, window_bounds = array<i64: 48, 73>}, {pipeline_mode = #tpu.pipeline_mode<synchronous>, transform_indices = @transform_4, window_bounds = array<i64: 9, 64, 16>}, {transform_indices = @transform_5, window_bounds = array<i64: 1, 32, 16>}]} {
    %c0 = arith.constant 0 : index
    %c0_0 = arith.constant 0 : index
    %c0_1 = arith.constant 0 : index
    %0 = vector.load %arg1[%c0, %c0_0, %c0_1] : memref<1x32x256xf32, #tpu.memory_space<vmem>>, vector<1x32x256xf32>
    %1 = vector.shape_cast %0 : vector<1x32x256xf32> to vector<32x256xf32>
    %c0_2 = arith.constant 0 : index
    %c0_3 = arith.constant 0 : index
    %2 = vector.load %arg2[%c0_2, %c0_3] : memref<24x37xf32, #tpu.memory_space<vmem>>, vector<4x32xf32>
    %3 = arith.truncf %2 : vector<4x32xf32> to vector<4x32xbf16>
    %c0_4 = arith.constant 0 : index
    %c36 = arith.constant 36 : index
    %4 = vector.load %arg2[%c0_4, %c36] : memref<24x37xf32, #tpu.memory_space<vmem>>, vector<4x1xf32>
    %c4 = arith.constant 4 : index
    %c0_5 = arith.constant 0 : index
    %5 = vector.load %arg2[%c4, %c0_5] : memref<24x37xf32, #tpu.memory_space<vmem>>, vector<4x36xf32>
    %6 = arith.truncf %5 : vector<4x36xf32> to vector<4x36xbf16>
    %c4_6 = arith.constant 4 : index
    %c36_7 = arith.constant 36 : index
    %7 = vector.load %arg2[%c4_6, %c36_7] : memref<24x37xf32, #tpu.memory_space<vmem>>, vector<4x1xf32>
    %c8 = arith.constant 8 : index
    %c0_8 = arith.constant 0 : index
    %8 = vector.load %arg2[%c8, %c0_8] : memref<24x37xf32, #tpu.memory_space<vmem>>, vector<16x4xf32>
    %9 = arith.truncf %8 : vector<16x4xf32> to vector<16x4xbf16>
    %c8_9 = arith.constant 8 : index
    %c4_10 = arith.constant 4 : index
    %10 = vector.load %arg2[%c8_9, %c4_10] : memref<24x37xf32, #tpu.memory_space<vmem>>, vector<16x32xf32>
    %11 = arith.truncf %10 : vector<16x32xf32> to vector<16x32xbf16>
    %c8_11 = arith.constant 8 : index
    %c36_12 = arith.constant 36 : index
    %12 = vector.load %arg2[%c8_11, %c36_12] : memref<24x37xf32, #tpu.memory_space<vmem>>, vector<16x1xf32>
    %13 = arith.truncf %1 : vector<32x256xf32> to vector<32x256xbf16>
    %cst = arith.constant dense<0.000000e+00> : vector<4x256xf32>
    %14 = tpu.matmul %3, %13, %cst {dimension_numbers = #tpu.dot_dimension_numbers<[1], [0], [0], [1], [0, 0, 1, 1], [], []>} : vector<4x32xbf16>, vector<32x256xbf16>, vector<4x256xf32> -> vector<4x256xf32>
    %15 = vector.broadcast %4 : vector<4x1xf32> to vector<4x256xf32>
    %16 = arith.addf %14, %15 : vector<4x256xf32>
    %cst_13 = arith.constant 0.000000e+00 : f32
    %17 = vector.broadcast %cst_13 : f32 to vector<4x256xf32>
    %18 = arith.maximumf %16, %17 : vector<4x256xf32>
    %19 = arith.truncf %18 : vector<4x256xf32> to vector<4x256xbf16>
    %c0_14 = arith.constant 0 : index
    %c0_15 = arith.constant 0 : index
    %c0_16 = arith.constant 0 : index
    %20 = vector.load %arg3[%c0_14, %c0_15, %c0_16] : memref<9x256x64xbf16, #tpu.memory_space<vmem>>, vector<1x256x64xbf16>
    %21 = vector.shape_cast %20 : vector<1x256x64xbf16> to vector<256x64xbf16>
    %cst_17 = arith.constant dense<0.000000e+00> : vector<4x64xf32>
    %22 = tpu.matmul %19, %21, %cst_17 {dimension_numbers = #tpu.dot_dimension_numbers<[1], [0], [0], [1], [0, 0, 1, 1], [], []>} : vector<4x256xbf16>, vector<256x64xbf16>, vector<4x64xf32> -> vector<4x64xf32>
    %c0_18 = arith.constant 0 : index
    %c0_19 = arith.constant 0 : index
    %23 = vector.load %arg7[%c0_18, %c0_19] : memref<36x64xf32, #tpu.memory_space<vmem>>, vector<4x64xf32>
    tpu.vector_store %arg7[%c0_18, %c0_19], %22 {strides = array<i32>} : memref<36x64xf32, #tpu.memory_space<vmem>>, vector<4x64xf32>,
    %c1 = arith.constant 1 : index
    %c0_20 = arith.constant 0 : index
    %c0_21 = arith.constant 0 : index
    %24 = vector.load %arg3[%c1, %c0_20, %c0_21] : memref<9x256x64xbf16, #tpu.memory_space<vmem>>, vector<1x256x64xbf16>
    %25 = vector.shape_cast %24 : vector<1x256x64xbf16> to vector<256x64xbf16>
    %cst_22 = arith.constant dense<0.000000e+00> : vector<4x64xf32>
    %26 = tpu.matmul %19, %25, %cst_22 {dimension_numbers = #tpu.dot_dimension_numbers<[1], [0], [0], [1], [0, 0, 1, 1], [], []>} : vector<4x256xbf16>, vector<256x64xbf16>, vector<4x64xf32> -> vector<4x64xf32>
    %c4_23 = arith.constant 4 : index
    %c0_24 = arith.constant 0 : index
    %27 = vector.load %arg7[%c4_23, %c0_24] : memref<36x64xf32, #tpu.memory_space<vmem>>, vector<4x64xf32>
    tpu.vector_store %arg7[%c4_23, %c0_24], %26 {strides = array<i32>} : memref<36x64xf32, #tpu.memory_space<vmem>>, vector<4x64xf32>,
    %c2 = arith.constant 2 : index
    %c0_25 = arith.constant 0 : index
    %c0_26 = arith.constant 0 : index
    %28 = vector.load %arg3[%c2, %c0_25, %c0_26] : memref<9x256x64xbf16, #tpu.memory_space<vmem>>, vector<1x256x64xbf16>
    %29 = vector.shape_cast %28 : vector<1x256x64xbf16> to vector<256x64xbf16>
    %cst_27 = arith.constant dense<0.000000e+00> : vector<4x64xf32>
    %30 = tpu.matmul %19, %29, %cst_27 {dimension_numbers = #tpu.dot_dimension_numbers<[1], [0], [0], [1], [0, 0, 1, 1], [], []>} : vector<4x256xbf16>, vector<256x64xbf16>, vector<4x64xf32> -> vector<4x64xf32>
    %c8_28 = arith.constant 8 : index
    %c0_29 = arith.constant 0 : index
    %31 = vector.load %arg7[%c8_28, %c0_29] : memref<36x64xf32, #tpu.memory_space<vmem>>, vector<4x64xf32>
    tpu.vector_store %arg7[%c8_28, %c0_29], %30 {strides = array<i32>} : memref<36x64xf32, #tpu.memory_space<vmem>>, vector<4x64xf32>,
    %c3 = arith.constant 3 : index
    %c0_30 = arith.constant 0 : index
    %c0_31 = arith.constant 0 : index
    %32 = vector.load %arg3[%c3, %c0_30, %c0_31] : memref<9x256x64xbf16, #tpu.memory_space<vmem>>, vector<1x256x64xbf16>
    %33 = vector.shape_cast %32 : vector<1x256x64xbf16> to vector<256x64xbf16>
    %cst_32 = arith.constant dense<0.000000e+00> : vector<4x64xf32>
    %34 = tpu.matmul %19, %33, %cst_32 {dimension_numbers = #tpu.dot_dimension_numbers<[1], [0], [0], [1], [0, 0, 1, 1], [], []>} : vector<4x256xbf16>, vector<256x64xbf16>, vector<4x64xf32> -> vector<4x64xf32>
    %c12 = arith.constant 12 : index
    %c0_33 = arith.constant 0 : index
    %35 = vector.load %arg7[%c12, %c0_33] : memref<36x64xf32, #tpu.memory_space<vmem>>, vector<4x64xf32>
    tpu.vector_store %arg7[%c12, %c0_33], %34 {strides = array<i32>} : memref<36x64xf32, #tpu.memory_space<vmem>>, vector<4x64xf32>,
    %c4_34 = arith.constant 4 : index
    %c0_35 = arith.constant 0 : index
    %c0_36 = arith.constant 0 : index
    %36 = vector.load %arg3[%c4_34, %c0_35, %c0_36] : memref<9x256x64xbf16, #tpu.memory_space<vmem>>, vector<1x256x64xbf16>
    %37 = vector.shape_cast %36 : vector<1x256x64xbf16> to vector<256x64xbf16>
    %cst_37 = arith.constant dense<0.000000e+00> : vector<4x64xf32>
    %38 = tpu.matmul %19, %37, %cst_37 {dimension_numbers = #tpu.dot_dimension_numbers<[1], [0], [0], [1], [0, 0, 1, 1], [], []>} : vector<4x256xbf16>, vector<256x64xbf16>, vector<4x64xf32> -> vector<4x64xf32>
    %c16 = arith.constant 16 : index
    %c0_38 = arith.constant 0 : index
    %39 = vector.load %arg7[%c16, %c0_38] : memref<36x64xf32, #tpu.memory_space<vmem>>, vector<4x64xf32>
    tpu.vector_store %arg7[%c16, %c0_38], %38 {strides = array<i32>} : memref<36x64xf32, #tpu.memory_space<vmem>>, vector<4x64xf32>,
    %c5 = arith.constant 5 : index
    %c0_39 = arith.constant 0 : index
    %c0_40 = arith.constant 0 : index
    %40 = vector.load %arg3[%c5, %c0_39, %c0_40] : memref<9x256x64xbf16, #tpu.memory_space<vmem>>, vector<1x256x64xbf16>
    %41 = vector.shape_cast %40 : vector<1x256x64xbf16> to vector<256x64xbf16>
    %cst_41 = arith.constant dense<0.000000e+00> : vector<4x64xf32>
    %42 = tpu.matmul %19, %41, %cst_41 {dimension_numbers = #tpu.dot_dimension_numbers<[1], [0], [0], [1], [0, 0, 1, 1], [], []>} : vector<4x256xbf16>, vector<256x64xbf16>, vector<4x64xf32> -> vector<4x64xf32>
    %c20 = arith.constant 20 : index
    %c0_42 = arith.constant 0 : index
    %43 = vector.load %arg7[%c20, %c0_42] : memref<36x64xf32, #tpu.memory_space<vmem>>, vector<4x64xf32>
    tpu.vector_store %arg7[%c20, %c0_42], %42 {strides = array<i32>} : memref<36x64xf32, #tpu.memory_space<vmem>>, vector<4x64xf32>,
    %c6 = arith.constant 6 : index
    %c0_43 = arith.constant 0 : index
    %c0_44 = arith.constant 0 : index
    %44 = vector.load %arg3[%c6, %c0_43, %c0_44] : memref<9x256x64xbf16, #tpu.memory_space<vmem>>, vector<1x256x64xbf16>
    %45 = vector.shape_cast %44 : vector<1x256x64xbf16> to vector<256x64xbf16>
    %cst_45 = arith.constant dense<0.000000e+00> : vector<4x64xf32>
    %46 = tpu.matmul %19, %45, %cst_45 {dimension_numbers = #tpu.dot_dimension_numbers<[1], [0], [0], [1], [0, 0, 1, 1], [], []>} : vector<4x256xbf16>, vector<256x64xbf16>, vector<4x64xf32> -> vector<4x64xf32>
    %c24 = arith.constant 24 : index
    %c0_46 = arith.constant 0 : index
    %47 = vector.load %arg7[%c24, %c0_46] : memref<36x64xf32, #tpu.memory_space<vmem>>, vector<4x64xf32>
    tpu.vector_store %arg7[%c24, %c0_46], %46 {strides = array<i32>} : memref<36x64xf32, #tpu.memory_space<vmem>>, vector<4x64xf32>,
    %c7 = arith.constant 7 : index
    %c0_47 = arith.constant 0 : index
    %c0_48 = arith.constant 0 : index
    %48 = vector.load %arg3[%c7, %c0_47, %c0_48] : memref<9x256x64xbf16, #tpu.memory_space<vmem>>, vector<1x256x64xbf16>
    %49 = vector.shape_cast %48 : vector<1x256x64xbf16> to vector<256x64xbf16>
    %cst_49 = arith.constant dense<0.000000e+00> : vector<4x64xf32>
    %50 = tpu.matmul %19, %49, %cst_49 {dimension_numbers = #tpu.dot_dimension_numbers<[1], [0], [0], [1], [0, 0, 1, 1], [], []>} : vector<4x256xbf16>, vector<256x64xbf16>, vector<4x64xf32> -> vector<4x64xf32>
    %c28 = arith.constant 28 : index
    %c0_50 = arith.constant 0 : index
    %51 = vector.load %arg7[%c28, %c0_50] : memref<36x64xf32, #tpu.memory_space<vmem>>, vector<4x64xf32>
    tpu.vector_store %arg7[%c28, %c0_50], %50 {strides = array<i32>} : memref<36x64xf32, #tpu.memory_space<vmem>>, vector<4x64xf32>,
    %c8_51 = arith.constant 8 : index
    %c0_52 = arith.constant 0 : index
    %c0_53 = arith.constant 0 : index
    %52 = vector.load %arg3[%c8_51, %c0_52, %c0_53] : memref<9x256x64xbf16, #tpu.memory_space<vmem>>, vector<1x256x64xbf16>
    %53 = vector.shape_cast %52 : vector<1x256x64xbf16> to vector<256x64xbf16>
    %cst_54 = arith.constant dense<0.000000e+00> : vector<4x64xf32>
    %54 = tpu.matmul %19, %53, %cst_54 {dimension_numbers = #tpu.dot_dimension_numbers<[1], [0], [0], [1], [0, 0, 1, 1], [], []>} : vector<4x256xbf16>, vector<256x64xbf16>, vector<4x64xf32> -> vector<4x64xf32>
    %c32 = arith.constant 32 : index
    %c0_55 = arith.constant 0 : index
    %55 = vector.load %arg7[%c32, %c0_55] : memref<36x64xf32, #tpu.memory_space<vmem>>, vector<4x64xf32>
    tpu.vector_store %arg7[%c32, %c0_55], %54 {strides = array<i32>} : memref<36x64xf32, #tpu.memory_space<vmem>>, vector<4x64xf32>,
    %c0_56 = arith.constant 0 : index
    %c0_57 = arith.constant 0 : index
    %56 = vector.load %arg7[%c0_56, %c0_57] : memref<36x64xf32, #tpu.memory_space<vmem>>, vector<36x64xf32>
    %57 = arith.truncf %56 : vector<36x64xf32> to vector<36x64xbf16>
    %cst_58 = arith.constant dense<0.000000e+00> : vector<4x64xf32>
    %58 = tpu.matmul %6, %57, %cst_58 {dimension_numbers = #tpu.dot_dimension_numbers<[1], [0], [0], [1], [0, 0, 1, 1], [], []>} : vector<4x36xbf16>, vector<36x64xbf16>, vector<4x64xf32> -> vector<4x64xf32>
    %59 = vector.broadcast %7 : vector<4x1xf32> to vector<4x64xf32>
    %60 = arith.addf %58, %59 : vector<4x64xf32>
    %cst_59 = arith.constant 0.000000e+00 : f32
    %61 = vector.broadcast %cst_59 : f32 to vector<4x64xf32>
    %62 = arith.maximumf %60, %61 : vector<4x64xf32>
    %c4_60 = arith.constant 4 : index
    %c0_61 = arith.constant 0 : index
    %c0_62 = arith.constant 0 : index
    %63 = vector.load %arg3[%c4_60, %c0_61, %c0_62] : memref<9x256x64xbf16, #tpu.memory_space<vmem>>, vector<1x256x64xbf16>
    %64 = vector.shape_cast %63 : vector<1x256x64xbf16> to vector<256x64xbf16>
    %cst_63 = arith.constant dense<0.000000e+00> : vector<32x64xf32>
    %65 = tpu.matmul %13, %64, %cst_63 {dimension_numbers = #tpu.dot_dimension_numbers<[1], [0], [0], [1], [0, 0, 1, 1], [], []>} : vector<32x256xbf16>, vector<256x64xbf16>, vector<32x64xf32> -> vector<32x64xf32>
    %66 = arith.truncf %65 : vector<32x64xf32> to vector<32x64xbf16>
    %67 = arith.truncf %62 : vector<4x64xf32> to vector<4x64xbf16>
    %cst_64 = arith.constant dense<0.000000e+00> : vector<16x64xf32>
    %68 = tpu.matmul %9, %67, %cst_64 {dimension_numbers = #tpu.dot_dimension_numbers<[1], [0], [0], [1], [0, 0, 1, 1], [], []>} : vector<16x4xbf16>, vector<4x64xbf16>, vector<16x64xf32> -> vector<16x64xf32>
    %cst_65 = arith.constant dense<0.000000e+00> : vector<16x64xf32>
    %69 = tpu.matmul %11, %66, %cst_65 {dimension_numbers = #tpu.dot_dimension_numbers<[1], [0], [0], [1], [0, 0, 1, 1], [], []>} : vector<16x32xbf16>, vector<32x64xbf16>, vector<16x64xf32> -> vector<16x64xf32>
    %70 = arith.addf %68, %69 : vector<16x64xf32>
    %71 = vector.broadcast %12 : vector<16x1xf32> to vector<16x64xf32>
    %72 = arith.addf %70, %71 : vector<16x64xf32>
    %c0_66 = arith.constant 0 : index
    %c0_67 = arith.constant 0 : index
    %73 = vector.load %arg4[%c0_66, %c0_67] : memref<48x73xf32, #tpu.memory_space<vmem>>, vector<8x16xf32>
    %74 = arith.truncf %73 : vector<8x16xf32> to vector<8x16xbf16>
    %c0_68 = arith.constant 0 : index
    %c72 = arith.constant 72 : index
    %75 = vector.load %arg4[%c0_68, %c72] : memref<48x73xf32, #tpu.memory_space<vmem>>, vector<8x1xf32>
    %c8_69 = arith.constant 8 : index
    %c0_70 = arith.constant 0 : index
    %76 = vector.load %arg4[%c8_69, %c0_70] : memref<48x73xf32, #tpu.memory_space<vmem>>, vector<8x72xf32>
    %77 = arith.truncf %76 : vector<8x72xf32> to vector<8x72xbf16>
    %c8_71 = arith.constant 8 : index
    %c72_72 = arith.constant 72 : index
    %78 = vector.load %arg4[%c8_71, %c72_72] : memref<48x73xf32, #tpu.memory_space<vmem>>, vector<8x1xf32>
    %c16_73 = arith.constant 16 : index
    %c0_74 = arith.constant 0 : index
    %79 = vector.load %arg4[%c16_73, %c0_74] : memref<48x73xf32, #tpu.memory_space<vmem>>, vector<32x8xf32>
    %80 = arith.truncf %79 : vector<32x8xf32> to vector<32x8xbf16>
    %c16_75 = arith.constant 16 : index
    %c8_76 = arith.constant 8 : index
    %81 = vector.load %arg4[%c16_75, %c8_76] : memref<48x73xf32, #tpu.memory_space<vmem>>, vector<32x16xf32>
    %82 = arith.truncf %81 : vector<32x16xf32> to vector<32x16xbf16>
    %c16_77 = arith.constant 16 : index
    %c72_78 = arith.constant 72 : index
    %83 = vector.load %arg4[%c16_77, %c72_78] : memref<48x73xf32, #tpu.memory_space<vmem>>, vector<32x1xf32>
    %84 = arith.truncf %72 : vector<16x64xf32> to vector<16x64xbf16>
    %cst_79 = arith.constant dense<0.000000e+00> : vector<8x64xf32>
    %85 = tpu.matmul %74, %84, %cst_79 {dimension_numbers = #tpu.dot_dimension_numbers<[1], [0], [0], [1], [0, 0, 1, 1], [], []>} : vector<8x16xbf16>, vector<16x64xbf16>, vector<8x64xf32> -> vector<8x64xf32>
    %86 = vector.broadcast %75 : vector<8x1xf32> to vector<8x64xf32>
    %87 = arith.addf %85, %86 : vector<8x64xf32>
    %cst_80 = arith.constant 0.000000e+00 : f32
    %88 = vector.broadcast %cst_80 : f32 to vector<8x64xf32>
    %89 = arith.maximumf %87, %88 : vector<8x64xf32>
    %90 = arith.truncf %89 : vector<8x64xf32> to vector<8x64xbf16>
    %c0_81 = arith.constant 0 : index
    %c0_82 = arith.constant 0 : index
    %c0_83 = arith.constant 0 : index
    %91 = vector.load %arg5[%c0_81, %c0_82, %c0_83] : memref<9x64x16xbf16, #tpu.memory_space<vmem>>, vector<1x64x16xbf16>
    %92 = vector.shape_cast %91 : vector<1x64x16xbf16> to vector<64x16xbf16>
    %cst_84 = arith.constant dense<0.000000e+00> : vector<8x16xf32>
    %93 = tpu.matmul %90, %92, %cst_84 {dimension_numbers = #tpu.dot_dimension_numbers<[1], [0], [0], [1], [0, 0, 1, 1], [], []>} : vector<8x64xbf16>, vector<64x16xbf16>, vector<8x16xf32> -> vector<8x16xf32>
    %c0_85 = arith.constant 0 : index
    %c0_86 = arith.constant 0 : index
    %94 = vector.load %arg8[%c0_85, %c0_86] : memref<72x16xf32, #tpu.memory_space<vmem>>, vector<8x16xf32>
    tpu.vector_store %arg8[%c0_85, %c0_86], %93 {strides = array<i32>} : memref<72x16xf32, #tpu.memory_space<vmem>>, vector<8x16xf32>,
    %c1_87 = arith.constant 1 : index
    %c0_88 = arith.constant 0 : index
    %c0_89 = arith.constant 0 : index
    %95 = vector.load %arg5[%c1_87, %c0_88, %c0_89] : memref<9x64x16xbf16, #tpu.memory_space<vmem>>, vector<1x64x16xbf16>
    %96 = vector.shape_cast %95 : vector<1x64x16xbf16> to vector<64x16xbf16>
    %cst_90 = arith.constant dense<0.000000e+00> : vector<8x16xf32>
    %97 = tpu.matmul %90, %96, %cst_90 {dimension_numbers = #tpu.dot_dimension_numbers<[1], [0], [0], [1], [0, 0, 1, 1], [], []>} : vector<8x64xbf16>, vector<64x16xbf16>, vector<8x16xf32> -> vector<8x16xf32>
    %c8_91 = arith.constant 8 : index
    %c0_92 = arith.constant 0 : index
    %98 = vector.load %arg8[%c8_91, %c0_92] : memref<72x16xf32, #tpu.memory_space<vmem>>, vector<8x16xf32>
    tpu.vector_store %arg8[%c8_91, %c0_92], %97 {strides = array<i32>} : memref<72x16xf32, #tpu.memory_space<vmem>>, vector<8x16xf32>,
    %c2_93 = arith.constant 2 : index
    %c0_94 = arith.constant 0 : index
    %c0_95 = arith.constant 0 : index
    %99 = vector.load %arg5[%c2_93, %c0_94, %c0_95] : memref<9x64x16xbf16, #tpu.memory_space<vmem>>, vector<1x64x16xbf16>
    %100 = vector.shape_cast %99 : vector<1x64x16xbf16> to vector<64x16xbf16>
    %cst_96 = arith.constant dense<0.000000e+00> : vector<8x16xf32>
    %101 = tpu.matmul %90, %100, %cst_96 {dimension_numbers = #tpu.dot_dimension_numbers<[1], [0], [0], [1], [0, 0, 1, 1], [], []>} : vector<8x64xbf16>, vector<64x16xbf16>, vector<8x16xf32> -> vector<8x16xf32>
    %c16_97 = arith.constant 16 : index
    %c0_98 = arith.constant 0 : index
    %102 = vector.load %arg8[%c16_97, %c0_98] : memref<72x16xf32, #tpu.memory_space<vmem>>, vector<8x16xf32>
    tpu.vector_store %arg8[%c16_97, %c0_98], %101 {strides = array<i32>} : memref<72x16xf32, #tpu.memory_space<vmem>>, vector<8x16xf32>,
    %c3_99 = arith.constant 3 : index
    %c0_100 = arith.constant 0 : index
    %c0_101 = arith.constant 0 : index
    %103 = vector.load %arg5[%c3_99, %c0_100, %c0_101] : memref<9x64x16xbf16, #tpu.memory_space<vmem>>, vector<1x64x16xbf16>
    %104 = vector.shape_cast %103 : vector<1x64x16xbf16> to vector<64x16xbf16>
    %cst_102 = arith.constant dense<0.000000e+00> : vector<8x16xf32>
    %105 = tpu.matmul %90, %104, %cst_102 {dimension_numbers = #tpu.dot_dimension_numbers<[1], [0], [0], [1], [0, 0, 1, 1], [], []>} : vector<8x64xbf16>, vector<64x16xbf16>, vector<8x16xf32> -> vector<8x16xf32>
    %c24_103 = arith.constant 24 : index
    %c0_104 = arith.constant 0 : index
    %106 = vector.load %arg8[%c24_103, %c0_104] : memref<72x16xf32, #tpu.memory_space<vmem>>, vector<8x16xf32>
    tpu.vector_store %arg8[%c24_103, %c0_104], %105 {strides = array<i32>} : memref<72x16xf32, #tpu.memory_space<vmem>>, vector<8x16xf32>,
    %c4_105 = arith.constant 4 : index
    %c0_106 = arith.constant 0 : index
    %c0_107 = arith.constant 0 : index
    %107 = vector.load %arg5[%c4_105, %c0_106, %c0_107] : memref<9x64x16xbf16, #tpu.memory_space<vmem>>, vector<1x64x16xbf16>
    %108 = vector.shape_cast %107 : vector<1x64x16xbf16> to vector<64x16xbf16>
    %cst_108 = arith.constant dense<0.000000e+00> : vector<8x16xf32>
    %109 = tpu.matmul %90, %108, %cst_108 {dimension_numbers = #tpu.dot_dimension_numbers<[1], [0], [0], [1], [0, 0, 1, 1], [], []>} : vector<8x64xbf16>, vector<64x16xbf16>, vector<8x16xf32> -> vector<8x16xf32>
    %c32_109 = arith.constant 32 : index
    %c0_110 = arith.constant 0 : index
    %110 = vector.load %arg8[%c32_109, %c0_110] : memref<72x16xf32, #tpu.memory_space<vmem>>, vector<8x16xf32>
    tpu.vector_store %arg8[%c32_109, %c0_110], %109 {strides = array<i32>} : memref<72x16xf32, #tpu.memory_space<vmem>>, vector<8x16xf32>,
    %c5_111 = arith.constant 5 : index
    %c0_112 = arith.constant 0 : index
    %c0_113 = arith.constant 0 : index
    %111 = vector.load %arg5[%c5_111, %c0_112, %c0_113] : memref<9x64x16xbf16, #tpu.memory_space<vmem>>, vector<1x64x16xbf16>
    %112 = vector.shape_cast %111 : vector<1x64x16xbf16> to vector<64x16xbf16>
    %cst_114 = arith.constant dense<0.000000e+00> : vector<8x16xf32>
    %113 = tpu.matmul %90, %112, %cst_114 {dimension_numbers = #tpu.dot_dimension_numbers<[1], [0], [0], [1], [0, 0, 1, 1], [], []>} : vector<8x64xbf16>, vector<64x16xbf16>, vector<8x16xf32> -> vector<8x16xf32>
    %c40 = arith.constant 40 : index
    %c0_115 = arith.constant 0 : index
    %114 = vector.load %arg8[%c40, %c0_115] : memref<72x16xf32, #tpu.memory_space<vmem>>, vector<8x16xf32>
    tpu.vector_store %arg8[%c40, %c0_115], %113 {strides = array<i32>} : memref<72x16xf32, #tpu.memory_space<vmem>>, vector<8x16xf32>,
    %c6_116 = arith.constant 6 : index
    %c0_117 = arith.constant 0 : index
    %c0_118 = arith.constant 0 : index
    %115 = vector.load %arg5[%c6_116, %c0_117, %c0_118] : memref<9x64x16xbf16, #tpu.memory_space<vmem>>, vector<1x64x16xbf16>
    %116 = vector.shape_cast %115 : vector<1x64x16xbf16> to vector<64x16xbf16>
    %cst_119 = arith.constant dense<0.000000e+00> : vector<8x16xf32>
    %117 = tpu.matmul %90, %116, %cst_119 {dimension_numbers = #tpu.dot_dimension_numbers<[1], [0], [0], [1], [0, 0, 1, 1], [], []>} : vector<8x64xbf16>, vector<64x16xbf16>, vector<8x16xf32> -> vector<8x16xf32>
    %c48 = arith.constant 48 : index
    %c0_120 = arith.constant 0 : index
    %118 = vector.load %arg8[%c48, %c0_120] : memref<72x16xf32, #tpu.memory_space<vmem>>, vector<8x16xf32>
    tpu.vector_store %arg8[%c48, %c0_120], %117 {strides = array<i32>} : memref<72x16xf32, #tpu.memory_space<vmem>>, vector<8x16xf32>,
    %c7_121 = arith.constant 7 : index
    %c0_122 = arith.constant 0 : index
    %c0_123 = arith.constant 0 : index
    %119 = vector.load %arg5[%c7_121, %c0_122, %c0_123] : memref<9x64x16xbf16, #tpu.memory_space<vmem>>, vector<1x64x16xbf16>
    %120 = vector.shape_cast %119 : vector<1x64x16xbf16> to vector<64x16xbf16>
    %cst_124 = arith.constant dense<0.000000e+00> : vector<8x16xf32>
    %121 = tpu.matmul %90, %120, %cst_124 {dimension_numbers = #tpu.dot_dimension_numbers<[1], [0], [0], [1], [0, 0, 1, 1], [], []>} : vector<8x64xbf16>, vector<64x16xbf16>, vector<8x16xf32> -> vector<8x16xf32>
    %c56 = arith.constant 56 : index
    %c0_125 = arith.constant 0 : index
    %122 = vector.load %arg8[%c56, %c0_125] : memref<72x16xf32, #tpu.memory_space<vmem>>, vector<8x16xf32>
    tpu.vector_store %arg8[%c56, %c0_125], %121 {strides = array<i32>} : memref<72x16xf32, #tpu.memory_space<vmem>>, vector<8x16xf32>,
    %c8_126 = arith.constant 8 : index
    %c0_127 = arith.constant 0 : index
    %c0_128 = arith.constant 0 : index
    %123 = vector.load %arg5[%c8_126, %c0_127, %c0_128] : memref<9x64x16xbf16, #tpu.memory_space<vmem>>, vector<1x64x16xbf16>
    %124 = vector.shape_cast %123 : vector<1x64x16xbf16> to vector<64x16xbf16>
    %cst_129 = arith.constant dense<0.000000e+00> : vector<8x16xf32>
    %125 = tpu.matmul %90, %124, %cst_129 {dimension_numbers = #tpu.dot_dimension_numbers<[1], [0], [0], [1], [0, 0, 1, 1], [], []>} : vector<8x64xbf16>, vector<64x16xbf16>, vector<8x16xf32> -> vector<8x16xf32>
    %c64 = arith.constant 64 : index
    %c0_130 = arith.constant 0 : index
    %126 = vector.load %arg8[%c64, %c0_130] : memref<72x16xf32, #tpu.memory_space<vmem>>, vector<8x16xf32>
    tpu.vector_store %arg8[%c64, %c0_130], %125 {strides = array<i32>} : memref<72x16xf32, #tpu.memory_space<vmem>>, vector<8x16xf32>,
    %c0_131 = arith.constant 0 : index
    %c0_132 = arith.constant 0 : index
    %127 = vector.load %arg8[%c0_131, %c0_132] : memref<72x16xf32, #tpu.memory_space<vmem>>, vector<72x16xf32>
    %128 = arith.truncf %127 : vector<72x16xf32> to vector<72x16xbf16>
    %cst_133 = arith.constant dense<0.000000e+00> : vector<8x16xf32>
    %129 = tpu.matmul %77, %128, %cst_133 {dimension_numbers = #tpu.dot_dimension_numbers<[1], [0], [0], [1], [0, 0, 1, 1], [], []>} : vector<8x72xbf16>, vector<72x16xbf16>, vector<8x16xf32> -> vector<8x16xf32>
    %130 = vector.broadcast %78 : vector<8x1xf32> to vector<8x16xf32>
    %131 = arith.addf %129, %130 : vector<8x16xf32>
    %cst_134 = arith.constant 0.000000e+00 : f32
    %132 = vector.broadcast %cst_134 : f32 to vector<8x16xf32>
    %133 = arith.maximumf %131, %132 : vector<8x16xf32>
    %c4_135 = arith.constant 4 : index
    %c0_136 = arith.constant 0 : index
    %c0_137 = arith.constant 0 : index
    %134 = vector.load %arg5[%c4_135, %c0_136, %c0_137] : memref<9x64x16xbf16, #tpu.memory_space<vmem>>, vector<1x64x16xbf16>
    %135 = vector.shape_cast %134 : vector<1x64x16xbf16> to vector<64x16xbf16>
    %cst_138 = arith.constant dense<0.000000e+00> : vector<16x16xf32>
    %136 = tpu.matmul %84, %135, %cst_138 {dimension_numbers = #tpu.dot_dimension_numbers<[1], [0], [0], [1], [0, 0, 1, 1], [], []>} : vector<16x64xbf16>, vector<64x16xbf16>, vector<16x16xf32> -> vector<16x16xf32>
    %137 = arith.truncf %136 : vector<16x16xf32> to vector<16x16xbf16>
    %138 = arith.truncf %133 : vector<8x16xf32> to vector<8x16xbf16>
    %cst_139 = arith.constant dense<0.000000e+00> : vector<32x16xf32>
    %139 = tpu.matmul %80, %138, %cst_139 {dimension_numbers = #tpu.dot_dimension_numbers<[1], [0], [0], [1], [0, 0, 1, 1], [], []>} : vector<32x8xbf16>, vector<8x16xbf16>, vector<32x16xf32> -> vector<32x16xf32>
    %cst_140 = arith.constant dense<0.000000e+00> : vector<32x16xf32>
    %140 = tpu.matmul %82, %137, %cst_140 {dimension_numbers = #tpu.dot_dimension_numbers<[1], [0], [0], [1], [0, 0, 1, 1], [], []>} : vector<32x16xbf16>, vector<16x16xbf16>, vector<32x16xf32> -> vector<32x16xf32>
    %141 = arith.addf %139, %140 : vector<32x16xf32>
    %142 = vector.broadcast %83 : vector<32x1xf32> to vector<32x16xf32>
    %143 = arith.addf %141, %142 : vector<32x16xf32>
    %c0_141 = arith.constant 0 : index
    %c0_142 = arith.constant 0 : index
    %c0_143 = arith.constant 0 : index
    %144 = vector.load %arg6[%c0_141, %c0_142, %c0_143] : memref<1x32x16xf32, #tpu.memory_space<vmem>>, vector<1x32x16xf32>
    %145 = vector.shape_cast %144 : vector<1x32x16xf32> to vector<32x16xf32>
    %146 = vector.shape_cast %143 : vector<32x16xf32> to vector<1x32x16xf32>
    tpu.vector_store %arg6[%c0_141, %c0_142, %c0_143], %146 {strides = array<i32>} : memref<1x32x16xf32, #tpu.memory_space<vmem>>, vector<1x32x16xf32>,
    return
  }
  func.func @transform_0(%arg0: i32) -> (i32, i32, i32) {
    %c0_i32 = arith.constant 0 : i32
    %c0_i32_0 = arith.constant 0 : i32
    %c0_i32_1 = arith.constant 0 : i32
    return %arg0, %c0_i32, %c0_i32_0 : i32, i32, i32
  }
  func.func @transform_1(%arg0: i32) -> (i32, i32) {
    %c0_i32 = arith.constant 0 : i32
    %c0_i32_0 = arith.constant 0 : i32
    %c0_i32_1 = arith.constant 0 : i32
    return %c0_i32, %c0_i32_0 : i32, i32
  }
  func.func @transform_2(%arg0: i32) -> (i32, i32, i32) {
    %c0_i32 = arith.constant 0 : i32
    %c0_i32_0 = arith.constant 0 : i32
    %c0_i32_1 = arith.constant 0 : i32
    %c0_i32_2 = arith.constant 0 : i32
    return %c0_i32, %c0_i32_0, %c0_i32_1 : i32, i32, i32
  }
  func.func @transform_3(%arg0: i32) -> (i32, i32) {
    %c0_i32 = arith.constant 0 : i32
    %c0_i32_0 = arith.constant 0 : i32
    %c0_i32_1 = arith.constant 0 : i32
    return %c0_i32, %c0_i32_0 : i32, i32
  }
  func.func @transform_4(%arg0: i32) -> (i32, i32, i32) {
    %c0_i32 = arith.constant 0 : i32
    %c0_i32_0 = arith.constant 0 : i32
    %c0_i32_1 = arith.constant 0 : i32
    %c0_i32_2 = arith.constant 0 : i32
    return %c0_i32, %c0_i32_0, %c0_i32_1 : i32, i32, i32
  }
  func.func @transform_5(%arg0: i32) -> (i32, i32, i32) {
    %c0_i32 = arith.constant 0 : i32
    %c0_i32_0 = arith.constant 0 : i32
    %c0_i32_1 = arith.constant 0 : i32
    return %arg0, %c0_i32, %c0_i32_0 : i32, i32, i32
  }
}

</mosaic_0001>

<llo_original>
// kernel: tpu_custom_call.1
$region0: #{tpu_custom_call.1}
  #allocation0 [shape = 'u32[]', space=smem, size = 0x4, offset = 0x4, fixed_abs, tag = 'smem constant byte address 0x4 - core index']
  #allocation1 [shape = 'u32[72,128]{1,0:T(1,128)}', space=vmem, size = 0x9000, scoped, tag = 'internal scratch']
  #allocation2 [shape = 'f32[36,64]{1,0:T(8,128)}', space=vmem, size = 0x5000, scoped, tag = 'scratch operand']
  #allocation3 [shape = 'f32[72,16]{1,0:T(8,128)}', space=vmem, size = 0x9000, scoped, tag = 'scratch operand']
  %s0 = inlined_call_operand.vmem [shape: f32[2,32,256], index: 0, kind: input, shape index: {}]
  %s1 = inlined_call_operand.vmem [shape: f32[24,37], index: 1, kind: input, shape index: {}]
  %s2 = inlined_call_operand.vmem [shape: bf16[9,256,64], index: 2, kind: input, shape index: {}]
  %s3 = inlined_call_operand.vmem [shape: f32[48,73], index: 3, kind: input, shape index: {}]
  %s4 = inlined_call_operand.vmem [shape: bf16[9,64,16], index: 4, kind: input, shape index: {}]
  %s5 = inlined_call_operand.vmem [shape: f32[2,32,16], index: 5, kind: output, shape index: {}]
  %s6 = sld [smem:[#allocation0]]
  $region53: #{tpu_custom_call.1} parent=0
    _
  %s8 = ssub.s32 1, %s6
  %s9 = scalar_select 0, %s8, %s6
  loop: start=0, step=1, limit=4
  $region2: #{tpu_custom_call.1} parent=0 // loop_pre_header
    _
  $region3: #{tpu_custom_call.1} parent=0 // loop_header
    %s11 = sphi 0, %s15
    %p12 = scmp.ge.s32.totalorder %s11, 4
    %s21 = sphi 0, %s23
    %s24 = sphi 0, %s21
    %s25 = sphi 0, %s24
    %s41 = sphi 0, %s25
    %s45 = sphi 0, %s45
    %s47 = sphi 0, %s45
    %s48 = sphi 0, %s47
    %s62 = sphi 0, %s48
    %s66 = sphi 0, %s66
    %s68 = sphi 0, %s66
    %s69 = sphi 0, %s68
    %s83 = sphi 0, %s69
    %s87 = sphi 0, %s87
    %s89 = sphi 0, %s87
    %s90 = sphi 0, %s89
    %s104 = sphi 0, %s90
    %s108 = sphi 0, %s108
    %s110 = sphi 0, %s108
    %s111 = sphi 0, %s110
    %s125 = sphi 0, %s111
    %s131 = sphi 0, %s133
    %s134 = sphi 0, %s131
    %s135 = sphi 0, %s134
    %s151 = sphi 0, %s135
  $region4: #{tpu_custom_call.1} parent=0 // loop_header_branch
    %14 = sbr.rel (%p12) target = $region8
  $region5: #{tpu_custom_call.1} parent=0 // loop_body
    %s16 = ssub.s32 %s11, 1
    %s17 = ssub.s32 %s11, 2
    %s18 = sadd.s32 %s11, 1
    %s19 = ssub.s32 %s11, %s18
    %p20 = scmp.eq.s32.totalorder %s19, 0
    %s22 = sadd.s32 %s21, 1
    %s23 = scalar_select %p20, %s21, %s22
    %p26 = pneg %p20
    %p27 = scmp.eq.s32.totalorder %s11, 1
    %p28 = por %p26, %p27
    %p29 = scmp.ne.s32.totalorder %s21, %s24
    %p30 = scmp.eq.s32.totalorder %s11, 0
    %p31 = por %p29, %p30
    %p32 = scmp.ne.s32.totalorder %s21, %s24
    %p33 = scmp.eq.s32.totalorder %s16, 1
    %p34 = por %p32, %p33
    %p35 = scmp.ne.s32.totalorder %s24, %s25
    %p36 = scmp.eq.s32.totalorder %s16, 0
    %p37 = por %p35, %p36
    %p38 = scmp.ne.s32.totalorder %s24, %s25
    %p39 = scmp.eq.s32.totalorder %s17, 1
    %p40 = por %p38, %p39
    %p42 = scmp.ne.s32.totalorder %s25, %s41
    %p43 = scmp.eq.s32.totalorder %s17, 0
    %p44 = por %p42, %p43
    %s46 = sadd.s32 %s45, 1
    %p49 = scmp.eq.s32.totalorder %s11, 1
    %p50 = scmp.ne.s32.totalorder %s45, %s47
    %p51 = scmp.eq.s32.totalorder %s11, 0
    %p52 = por %p50, %p51
    %p53 = scmp.ne.s32.totalorder %s45, %s47
    %p54 = scmp.eq.s32.totalorder %s16, 1
    %p55 = por %p53, %p54
    %p56 = scmp.ne.s32.totalorder %s47, %s48
    %p57 = scmp.eq.s32.totalorder %s16, 0
    %p58 = por %p56, %p57
    %p59 = scmp.ne.s32.totalorder %s47, %s48
    %p60 = scmp.eq.s32.totalorder %s17, 1
    %p61 = por %p59, %p60
    %p63 = scmp.ne.s32.totalorder %s48, %s62
    %p64 = scmp.eq.s32.totalorder %s17, 0
    %p65 = por %p63, %p64
    %s67 = sadd.s32 %s66, 1
    %p70 = scmp.eq.s32.totalorder %s11, 1
    %p71 = scmp.ne.s32.totalorder %s66, %s68
    %p72 = scmp.eq.s32.totalorder %s11, 0
    %p73 = por %p71, %p72
    %p74 = scmp.ne.s32.totalorder %s66, %s68
    %p75 = scmp.eq.s32.totalorder %s16, 1
    %p76 = por %p74, %p75
    %p77 = scmp.ne.s32.totalorder %s68, %s69
    %p78 = scmp.eq.s32.totalorder %s16, 0
    %p79 = por %p77, %p78
    %p80 = scmp.ne.s32.totalorder %s68, %s69
    %p81 = scmp.eq.s32.totalorder %s17, 1
    %p82 = por %p80, %p81
    %p84 = scmp.ne.s32.totalorder %s69, %s83
    %p85 = scmp.eq.s32.totalorder %s17, 0
    %p86 = por %p84, %p85
    %s88 = sadd.s32 %s87, 1
    %p91 = scmp.eq.s32.totalorder %s11, 1
    %p92 = scmp.ne.s32.totalorder %s87, %s89
    %p93 = scmp.eq.s32.totalorder %s11, 0
    %p94 = por %p92, %p93
    %p95 = scmp.ne.s32.totalorder %s87, %s89
    %p96 = scmp.eq.s32.totalorder %s16, 1
    %p97 = por %p95, %p96
    %p98 = scmp.ne.s32.totalorder %s89, %s90
    %p99 = scmp.eq.s32.totalorder %s16, 0
    %p100 = por %p98, %p99
    %p101 = scmp.ne.s32.totalorder %s89, %s90
    %p102 = scmp.eq.s32.totalorder %s17, 1
    %p103 = por %p101, %p102
    %p105 = scmp.ne.s32.totalorder %s90, %s104
    %p106 = scmp.eq.s32.totalorder %s17, 0
    %p107 = por %p105, %p106
    %s109 = sadd.s32 %s108, 1
    %p112 = scmp.eq.s32.totalorder %s11, 1
    %p113 = scmp.ne.s32.totalorder %s108, %s110
    %p114 = scmp.eq.s32.totalorder %s11, 0
    %p115 = por %p113, %p114
    %p116 = scmp.ne.s32.totalorder %s108, %s110
    %p117 = scmp.eq.s32.totalorder %s16, 1
    %p118 = por %p116, %p117
    %p119 = scmp.ne.s32.totalorder %s110, %s111
    %p120 = scmp.eq.s32.totalorder %s16, 0
    %p121 = por %p119, %p120
    %p122 = scmp.ne.s32.totalorder %s110, %s111
    %p123 = scmp.eq.s32.totalorder %s17, 1
    %p124 = por %p122, %p123
    %p126 = scmp.ne.s32.totalorder %s111, %s125
    %p127 = scmp.eq.s32.totalorder %s17, 0
    %p128 = por %p126, %p127
    %s129 = ssub.s32 %s11, %s18
    %p130 = scmp.eq.s32.totalorder %s129, 0
    %s132 = sadd.s32 %s131, 1
    %s133 = scalar_select %p130, %s131, %s132
    %p136 = pneg %p130
    %p137 = scmp.eq.s32.totalorder %s11, 1
    %p138 = por %p136, %p137
    %p139 = scmp.ne.s32.totalorder %s131, %s134
    %p140 = scmp.eq.s32.totalorder %s11, 0
    %p141 = por %p139, %p140
    %p142 = scmp.ne.s32.totalorder %s131, %s134
    %p143 = scmp.eq.s32.totalorder %s16, 1
    %p144 = por %p142, %p143
    %p145 = scmp.ne.s32.totalorder %s134, %s135
    %p146 = scmp.eq.s32.totalorder %s16, 0
    %p147 = por %p145, %p146
    %p148 = scmp.ne.s32.totalorder %s134, %s135
    %p149 = scmp.eq.s32.totalorder %s17, 1
    %p150 = por %p148, %p149
    %p152 = scmp.ne.s32.totalorder %s135, %s151
    %p153 = scmp.eq.s32.totalorder %s17, 0
    %p154 = por %p152, %p153
    %p155 = scmp.le.s32.totalorder 1, %s11
    %p156 = scmp.lt.s32.totalorder %s11, 3
    %p157 = pnand %p155, %p156
    %p158 = pneg %p157
    // Predicated region
    $region9: #{tpu_custom_call.1} parent=5 // pred_check
      _
    $region10: #{tpu_custom_call.1} parent=5 // pred_check_branch
      %160 = sbr.rel (%p157) target = $region12
    $region11: #{tpu_custom_call.1} parent=5 // pred_region
      %s161 = ssub.s32 %s11, 1
      // Predicated region
      $region13: #{tpu_custom_call.1} parent=11 // pred_check
        %p162 = pneg %p58
      $region14: #{tpu_custom_call.1} parent=11 // pred_check_branch
        %164 = sbr.rel (%p162) target = $region16
      $region15: #{tpu_custom_call.1} parent=11 // pred_region
        _
      $region16: #{tpu_custom_call.1} parent=11 // pred_fallthru
        _
      // Predicated region
      $region17: #{tpu_custom_call.1} parent=11 // pred_check
        %p165 = pneg %p79
      $region18: #{tpu_custom_call.1} parent=11 // pred_check_branch
        %167 = sbr.rel (%p165) target = $region20
      $region19: #{tpu_custom_call.1} parent=11 // pred_region
        _
      $region20: #{tpu_custom_call.1} parent=11 // pred_fallthru
        _
      // Predicated region
      $region21: #{tpu_custom_call.1} parent=11 // pred_check
        %p168 = pneg %p100
      $region22: #{tpu_custom_call.1} parent=11 // pred_check_branch
        %170 = sbr.rel (%p168) target = $region24
      $region23: #{tpu_custom_call.1} parent=11 // pred_region
        _
      $region24: #{tpu_custom_call.1} parent=11 // pred_fallthru
        _
      // Predicated region
      $region25: #{tpu_custom_call.1} parent=11 // pred_check
        %p171 = pneg %p121
      $region26: #{tpu_custom_call.1} parent=11 // pred_check_branch
        %173 = sbr.rel (%p171) target = $region28
      $region27: #{tpu_custom_call.1} parent=11 // pred_region
        _
      $region28: #{tpu_custom_call.1} parent=11 // pred_fallthru
        _
    $region12: #{tpu_custom_call.1} parent=5 // pred_fallthru
      _
    %p174 = scmp.lt.s32.totalorder %s11, 2
    // Predicated region
    $region29: #{tpu_custom_call.1} parent=5 // pred_check
      %p175 = pneg %p174
    $region30: #{tpu_custom_call.1} parent=5 // pred_check_branch
      %177 = sbr.rel (%p175) target = $region32
    $region31: #{tpu_custom_call.1} parent=5 // pred_region
      // Predicated region
      $region33: #{tpu_custom_call.1} parent=31 // pred_check
        %p178 = pneg %p31
      $region34: #{tpu_custom_call.1} parent=31 // pred_check_branch
        %180 = sbr.rel (%p178) target = $region36
      $region35: #{tpu_custom_call.1} parent=31 // pred_region
        %p181 = scmp.lt.s32.totalorder %s11, 1
        %s182 = scalar_select %p181, %s11, 1
        %s183 = smul.addr %s182, 8
        %s184 = smul.addr %s183, 8
        %s185 = scalar_lea.vmem %s0, %s184
      $region36: #{tpu_custom_call.1} parent=31 // pred_fallthru
        _
    $region32: #{tpu_custom_call.1} parent=5 // pred_fallthru
      _
    %p186 = scmp.le.s32.totalorder 1, %s11
    %p187 = scmp.lt.s32.totalorder %s11, 3
    %p188 = pnand %p186, %p187
    %p189 = pneg %p188
    // Predicated region
    $region37: #{tpu_custom_call.1} parent=5 // pred_check
      _
    $region38: #{tpu_custom_call.1} parent=5 // pred_check_branch
      %191 = sbr.rel (%p188) target = $region40
    $region39: #{tpu_custom_call.1} parent=5 // pred_region
      %s192 = ssub.s32 %s11, 1
      %p193 = scmp.lt.s32.totalorder %s16, 1
      %s194 = scalar_select %p193, %s16, 1
      %s195 = smul.addr %s194, 8
      %s196 = smul.addr %s195, 8
      %s197 = scalar_lea.vmem %s0, %s196
      %p198 = pneg %p37
      %p199 = pneg %p34
      %p200 = pneg %p58
      %p201 = pneg %p55
      %p202 = pneg %p79
      %p203 = pneg %p76
      %p204 = pneg %p100
      %p205 = pneg %p97
      %p206 = pneg %p121
      %p207 = pneg %p118
      %p208 = pneg %p147
      %p209 = pneg %p144
      %p210 = scmp.lt.s32.totalorder %s16, 1
      %s211 = scalar_select %p210, %s16, 1
      %s212 = smul.addr %s211, 4
      %s213 = smul.addr %s212, 8
      %s214 = scalar_lea.vmem %s5, %s213
      %p215 = scmp.lt.s32.totalorder %s16, 1
      %s216 = scalar_select %p215, %s16, 1
      %s217 = smul.addr %s216, 8
      %s218 = smul.addr %s217, 8
      %s219 = scalar_lea.vmem %s0, %s218
      %p220 = scmp.lt.s32.totalorder %s16, 1
      %s221 = scalar_select %p220, %s16, 1
      %s222 = smul.addr %s221, 4
      %s223 = smul.addr %s222, 8
      %s224 = scalar_lea.vmem %s5, %s223
      %v226 = vld [vmem:[%s219] sm:$0xff]
      %v227 = vld [vmem:[%s219 + $0x8] sm:$0xff]
      %v228 = vld [vmem:[%s219 + $0x10] sm:$0xff]
      %v229 = vld [vmem:[%s219 + $0x18] sm:$0xff]
      %v230 = vld [vmem:[%s219 + $0x20] sm:$0xff]
      %v231 = vld [vmem:[%s219 + $0x28] sm:$0xff]
      %v232 = vld [vmem:[%s219 + $0x30] sm:$0xff]
      %v233 = vld [vmem:[%s219 + $0x38] sm:$0xff]
      %v234 = vld [vmem:[%s1] sm:$0xf]
      %v235 = vpack.c.bf16 %v234, %v234
      %v236 = vld [vmem:[%s1 + $0x4] sm:$0xf]
      %v237 = vpack.c.bf16 %v236, %v236
      %v238 = vld [vmem:[%s1 + $0x8] sm:$0xff]
      %v239 = vld [vmem:[%s1 + $0x10] sm:$0xff]
      %v240 = vpack.c.bf16 %v239, %v238
      %v241 = vpack.c.bf16 %v228, %v226
      %v242 = vpack.c.bf16 %v229, %v227
      %v243 = vpack.c.bf16 %v232, %v230
      %v244 = vpack.c.bf16 %v233, %v231
      %246 = vset.pattern.permute.xlu0 36
      %247 = vperm.xlu0 %246, %v234
      %v248 = vpop.permute.xlu0 %247
      %vm250 = vcmask 261120
      %v252 = vsel %vm250, %v235, 0
      %254 = vmatpush.bf16.msra.mxu0 0
      %255 = vmatpush.bf16.msra.mxu0 0
      %256 = vmatpush.bf16.msra.mxu0 0
      %257 = vmatpush.bf16.msra.mxu0 0
      %258 = vmatpush.bf16.msra.mxu0 0
      %259 = vmatpush.bf16.msra.mxu0 0
      %260 = vmatpush.bf16.msra.mxu0 %v243
      %261 = vmatpush.bf16.msra.mxu0 %v241
      %262 = vmatmul.bf16.gmra.mxu0 %v252
      %v263 = vpop.f32.mrf.mxu0
      %v264 = vadd.f32 %v248, %v263
      %v265 = vpop.f32.mrf.mxu0
      %266 = vdwg.mxu0
      %267 = vmatpush.bf16.msra.mxu0 0
      %268 = vmatpush.bf16.msra.mxu0 0
      %269 = vmatpush.bf16.msra.mxu0 0
      %270 = vmatpush.bf16.msra.mxu0 0
      %271 = vmatpush.bf16.msra.mxu0 0
      %272 = vmatpush.bf16.msra.mxu0 0
      %273 = vmatpush.bf16.msra.mxu0 %v244
      %274 = vmatpush.bf16.msra.mxu0 %v242
      %275 = vmatmul.bf16.gmra.mxu0 %v252
      %v276 = vpop.f32.mrf.mxu0
      %v277 = vadd.f32 %v248, %v276
      %v278 = vpop.f32.mrf.mxu0
      %279 = vdwg.mxu0
      %v280 = vmax.f32 %v264, 0.0
      %v281 = vmax.f32 %v277, 0.0
      %v282 = vpack.c.bf16 %v280, %v280
      %v283 = vpack.c.bf16 %v281, %v281
      %v284 = vld [vmem:[%s2] sm:$0xf]
      %v285 = vld [vmem:[%s2 + $0x4] sm:$0xf]
      %v286 = vld [vmem:[%s2 + $0x8] sm:$0xf]
      %v287 = vld [vmem:[%s2 + $0xc] sm:$0xf]
      %v288 = vld [vmem:[%s2 + $0x10] sm:$0xf]
      %v289 = vld [vmem:[%s2 + $0x14] sm:$0xf]
      %v290 = vld [vmem:[%s2 + $0x18] sm:$0xf]
      %v291 = vld [vmem:[%s2 + $0x1c] sm:$0xf]
      %v292 = vld [vmem:[%s2 + $0x20] sm:$0xf]
      %v293 = vld [vmem:[%s2 + $0x24] sm:$0xf]
      %v294 = vld [vmem:[%s2 + $0x28] sm:$0xf]
      %v295 = vld [vmem:[%s2 + $0x2c] sm:$0xf]
      %v296 = vld [vmem:[%s2 + $0x30] sm:$0xf]
      %v297 = vld [vmem:[%s2 + $0x34] sm:$0xf]
      %v298 = vld [vmem:[%s2 + $0x38] sm:$0xf]
      %v299 = vld [vmem:[%s2 + $0x3c] sm:$0xf]
      %v300 = vld [vmem:[%s2 + $0x40] sm:$0xf]
      %v301 = vld [vmem:[%s2 + $0x44] sm:$0xf]
      %v302 = vld [vmem:[%s2 + $0x48] sm:$0xf]
      %v303 = vld [vmem:[%s2 + $0x4c] sm:$0xf]
      %v304 = vld [vmem:[%s2 + $0x50] sm:$0xf]
      %v305 = vld [vmem:[%s2 + $0x54] sm:$0xf]
      %v306 = vld [vmem:[%s2 + $0x58] sm:$0xf]
      %v307 = vld [vmem:[%s2 + $0x5c] sm:$0xf]
      %v308 = vld [vmem:[%s2 + $0x60] sm:$0xf]
      %v309 = vld [vmem:[%s2 + $0x64] sm:$0xf]
      %v310 = vld [vmem:[%s2 + $0x68] sm:$0xf]
      %v311 = vld [vmem:[%s2 + $0x6c] sm:$0xf]
      %v312 = vld [vmem:[%s2 + $0x70] sm:$0xf]
      %v313 = vld [vmem:[%s2 + $0x74] sm:$0xf]
      %v314 = vld [vmem:[%s2 + $0x78] sm:$0xf]
      %v315 = vld [vmem:[%s2 + $0x7c] sm:$0xf]
      %v348 = vunpack.c.l.b16 %v284
      %v349 = vunpack.c.l.b16 %v285
      %v350 = vunpack.c.l.b16 %v286
      %v351 = vunpack.c.l.b16 %v287
      %v352 = vunpack.c.l.b16 %v288
      %v353 = vunpack.c.l.b16 %v289
      %v354 = vunpack.c.l.b16 %v290
      %v355 = vunpack.c.l.b16 %v291
      %v356 = vunpack.c.l.b16 %v292
      %v357 = vunpack.c.l.b16 %v293
      %v358 = vunpack.c.l.b16 %v294
      %v359 = vunpack.c.l.b16 %v295
      %v360 = vunpack.c.l.b16 %v296
      %v361 = vunpack.c.l.b16 %v297
      %v362 = vunpack.c.l.b16 %v298
      %v363 = vunpack.c.l.b16 %v299
      %v364 = vunpack.c.l.b16 %v300
      %v365 = vunpack.c.l.b16 %v301
      %v366 = vunpack.c.l.b16 %v302
      %v367 = vunpack.c.l.b16 %v303
      %v368 = vunpack.c.l.b16 %v304
      %v369 = vunpack.c.l.b16 %v305
      %v370 = vunpack.c.l.b16 %v306
      %v371 = vunpack.c.l.b16 %v307
      %v372 = vunpack.c.l.b16 %v308
      %v373 = vunpack.c.l.b16 %v309
      %v374 = vunpack.c.l.b16 %v310
      %v375 = vunpack.c.l.b16 %v311
      %v376 = vunpack.c.l.b16 %v312
      %v377 = vunpack.c.l.b16 %v313
      %v378 = vunpack.c.l.b16 %v314
      %v379 = vunpack.c.l.b16 %v315
      %v380 = vpack.c.b16 %v349, %v348
      %v381 = vpack.c.b16 %v351, %v350
      %v382 = vpack.c.b16 %v353, %v352
      %v383 = vpack.c.b16 %v355, %v354
      %v384 = vpack.c.b16 %v357, %v356
      %v385 = vpack.c.b16 %v359, %v358
      %v386 = vpack.c.b16 %v361, %v360
      %v387 = vpack.c.b16 %v363, %v362
      %v388 = vpack.c.b16 %v365, %v364
      %v389 = vpack.c.b16 %v367, %v366
      %v390 = vpack.c.b16 %v369, %v368
      %v391 = vpack.c.b16 %v371, %v370
      %v392 = vpack.c.b16 %v373, %v372
      %v393 = vpack.c.b16 %v375, %v374
      %v394 = vpack.c.b16 %v377, %v376
      %v395 = vpack.c.b16 %v379, %v378
      %412 = vmatpush.bf16.msra.mxu0 %v387
      %413 = vmatpush.bf16.msra.mxu0 %v386
      %414 = vmatpush.bf16.msra.mxu0 %v385
      %415 = vmatpush.bf16.msra.mxu0 %v384
      %416 = vmatpush.bf16.msra.mxu0 %v383
      %417 = vmatpush.bf16.msra.mxu0 %v382
      %418 = vmatpush.bf16.msra.mxu0 %v381
      %419 = vmatpush.bf16.msra.mxu0 %v380
      %420 = vmatmul.bf16.gmra.mxu0 %v282
      %v421 = vpop.f32.mrf.mxu0
      %v422 = vadd.f32 0.0, %v421
      %v423 = vpop.f32.mrf.mxu0
      %424 = vdwg.mxu0
      %425 = vmatpush.bf16.msra.mxu0 %v395
      %426 = vmatpush.bf16.msra.mxu0 %v394
      %427 = vmatpush.bf16.msra.mxu0 %v393
      %428 = vmatpush.bf16.msra.mxu0 %v392
      %429 = vmatpush.bf16.msra.mxu0 %v391
      %430 = vmatpush.bf16.msra.mxu0 %v390
      %431 = vmatpush.bf16.msra.mxu0 %v389
      %432 = vmatpush.bf16.msra.mxu0 %v388
      %433 = vmatmul.bf16.gmra.mxu0 %v283
      %v434 = vpop.f32.mrf.mxu0
      %v435 = vadd.f32 %v422, %v434
      %v436 = vpop.f32.mrf.mxu0
      %437 = vdwg.mxu0
      %vm438 = vcmask 519168
      %439 = vst.msk [vmem:[#allocation2] sm:$0xf] %vm438, %v435
      %s440 = scalar_lea.vmem %s2, 128
      %v441 = vld [vmem:[%s440] sm:$0xf]
      %v442 = vld [vmem:[%s440 + $0x4] sm:$0xf]
      %v443 = vld [vmem:[%s440 + $0x8] sm:$0xf]
      %v444 = vld [vmem:[%s440 + $0xc] sm:$0xf]
      %v445 = vld [vmem:[%s440 + $0x10] sm:$0xf]
      %v446 = vld [vmem:[%s440 + $0x14] sm:$0xf]
      %v447 = vld [vmem:[%s440 + $0x18] sm:$0xf]
      %v448 = vld [vmem:[%s440 + $0x1c] sm:$0xf]
      %v449 = vld [vmem:[%s440 + $0x20] sm:$0xf]
      %v450 = vld [vmem:[%s440 + $0x24] sm:$0xf]
      %v451 = vld [vmem:[%s440 + $0x28] sm:$0xf]
      %v452 = vld [vmem:[%s440 + $0x2c] sm:$0xf]
      %v453 = vld [vmem:[%s440 + $0x30] sm:$0xf]
      %v454 = vld [vmem:[%s440 + $0x34] sm:$0xf]
      %v455 = vld [vmem:[%s440 + $0x38] sm:$0xf]
      %v456 = vld [vmem:[%s440 + $0x3c] sm:$0xf]
      %v457 = vld [vmem:[%s440 + $0x40] sm:$0xf]
      %v458 = vld [vmem:[%s440 + $0x44] sm:$0xf]
      %v459 = vld [vmem:[%s440 + $0x48] sm:$0xf]
      %v460 = vld [vmem:[%s440 + $0x4c] sm:$0xf]
      %v461 = vld [vmem:[%s440 + $0x50] sm:$0xf]
      %v462 = vld [vmem:[%s440 + $0x54] sm:$0xf]
      %v463 = vld [vmem:[%s440 + $0x58] sm:$0xf]
      %v464 = vld [vmem:[%s440 + $0x5c] sm:$0xf]
      %v465 = vld [vmem:[%s440 + $0x60] sm:$0xf]
      %v466 = vld [vmem:[%s440 + $0x64] sm:$0xf]
      %v467 = vld [vmem:[%s440 + $0x68] sm:$0xf]
      %v468 = vld [vmem:[%s440 + $0x6c] sm:$0xf]
      %v469 = vld [vmem:[%s440 + $0x70] sm:$0xf]
      %v470 = vld [vmem:[%s440 + $0x74] sm:$0xf]
      %v471 = vld [vmem:[%s440 + $0x78] sm:$0xf]
      %v472 = vld [vmem:[%s440 + $0x7c] sm:$0xf]
      %v505 = vunpack.c.l.b16 %v441
      %v506 = vunpack.c.l.b16 %v442
      %v507 = vunpack.c.l.b16 %v443
      %v508 = vunpack.c.l.b16 %v444
      %v509 = vunpack.c.l.b16 %v445
      %v510 = vunpack.c.l.b16 %v446
      %v511 = vunpack.c.l.b16 %v447
      %v512 = vunpack.c.l.b16 %v448
      %v513 = vunpack.c.l.b16 %v449
      %v514 = vunpack.c.l.b16 %v450
      %v515 = vunpack.c.l.b16 %v451
      %v516 = vunpack.c.l.b16 %v452
      %v517 = vunpack.c.l.b16 %v453
      %v518 = vunpack.c.l.b16 %v454
      %v519 = vunpack.c.l.b16 %v455
      %v520 = vunpack.c.l.b16 %v456
      %v521 = vunpack.c.l.b16 %v457
      %v522 = vunpack.c.l.b16 %v458
      %v523 = vunpack.c.l.b16 %v459
      %v524 = vunpack.c.l.b16 %v460
      %v525 = vunpack.c.l.b16 %v461
      %v526 = vunpack.c.l.b16 %v462
      %v527 = vunpack.c.l.b16 %v463
      %v528 = vunpack.c.l.b16 %v464
      %v529 = vunpack.c.l.b16 %v465
      %v530 = vunpack.c.l.b16 %v466
      %v531 = vunpack.c.l.b16 %v467
      %v532 = vunpack.c.l.b16 %v468
      %v533 = vunpack.c.l.b16 %v469
      %v534 = vunpack.c.l.b16 %v470
      %v535 = vunpack.c.l.b16 %v471
      %v536 = vunpack.c.l.b16 %v472
      %v537 = vpack.c.b16 %v506, %v505
      %v538 = vpack.c.b16 %v508, %v507
      %v539 = vpack.c.b16 %v510, %v509
      %v540 = vpack.c.b16 %v512, %v511
      %v541 = vpack.c.b16 %v514, %v513
      %v542 = vpack.c.b16 %v516, %v515
      %v543 = vpack.c.b16 %v518, %v517
      %v544 = vpack.c.b16 %v520, %v519
      %v545 = vpack.c.b16 %v522, %v521
      %v546 = vpack.c.b16 %v524, %v523
      %v547 = vpack.c.b16 %v526, %v525
      %v548 = vpack.c.b16 %v528, %v527
      %v549 = vpack.c.b16 %v530, %v529
      %v550 = vpack.c.b16 %v532, %v531
      %v551 = vpack.c.b16 %v534, %v533
      %v552 = vpack.c.b16 %v536, %v535
      %569 = vmatpush.bf16.msra.mxu0 %v544
      %570 = vmatpush.bf16.msra.mxu0 %v543
      %571 = vmatpush.bf16.msra.mxu0 %v542
      %572 = vmatpush.bf16.msra.mxu0 %v541
      %573 = vmatpush.bf16.msra.mxu0 %v540
      %574 = vmatpush.bf16.msra.mxu0 %v539
      %575 = vmatpush.bf16.msra.mxu0 %v538
      %576 = vmatpush.bf16.msra.mxu0 %v537
      %577 = vmatmul.bf16.gmra.mxu0 %v282
      %v578 = vpop.f32.mrf.mxu0
      %v579 = vadd.f32 0.0, %v578
      %v580 = vpop.f32.mrf.mxu0
      %581 = vdwg.mxu0
      %582 = vmatpush.bf16.msra.mxu0 %v552
      %583 = vmatpush.bf16.msra.mxu0 %v551
      %584 = vmatpush.bf16.msra.mxu0 %v550
      %585 = vmatpush.bf16.msra.mxu0 %v549
      %586 = vmatpush.bf16.msra.mxu0 %v548
      %587 = vmatpush.bf16.msra.mxu0 %v547
      %588 = vmatpush.bf16.msra.mxu0 %v546
      %589 = vmatpush.bf16.msra.mxu0 %v545
      %590 = vmatmul.bf16.gmra.mxu0 %v283
      %v591 = vpop.f32.mrf.mxu0
      %v592 = vadd.f32 %v579, %v591
      %v593 = vpop.f32.mrf.mxu0
      %594 = vdwg.mxu0
      %595 = vst.msk [vmem:[#allocation2 + $0x4] sm:$0xf] %vm438, %v592
      %s596 = scalar_lea.vmem %s2, 256
      %v597 = vld [vmem:[%s596] sm:$0xf]
      %v598 = vld [vmem:[%s596 + $0x4] sm:$0xf]
      %v599 = vld [vmem:[%s596 + $0x8] sm:$0xf]
      %v600 = vld [vmem:[%s596 + $0xc] sm:$0xf]
      %v601 = vld [vmem:[%s596 + $0x10] sm:$0xf]
      %v602 = vld [vmem:[%s596 + $0x14] sm:$0xf]
      %v603 = vld [vmem:[%s596 + $0x18] sm:$0xf]
      %v604 = vld [vmem:[%s596 + $0x1c] sm:$0xf]
      %v605 = vld [vmem:[%s596 + $0x20] sm:$0xf]
      %v606 = vld [vmem:[%s596 + $0x24] sm:$0xf]
      %v607 = vld [vmem:[%s596 + $0x28] sm:$0xf]
      %v608 = vld [vmem:[%s596 + $0x2c] sm:$0xf]
      %v609 = vld [vmem:[%s596 + $0x30] sm:$0xf]
      %v610 = vld [vmem:[%s596 + $0x34] sm:$0xf]
      %v611 = vld [vmem:[%s596 + $0x38] sm:$0xf]
      %v612 = vld [vmem:[%s596 + $0x3c] sm:$0xf]
      %v613 = vld [vmem:[%s596 + $0x40] sm:$0xf]
      %v614 = vld [vmem:[%s596 + $0x44] sm:$0xf]
      %v615 = vld [vmem:[%s596 + $0x48] sm:$0xf]
      %v616 = vld [vmem:[%s596 + $0x4c] sm:$0xf]
      %v617 = vld [vmem:[%s596 + $0x50] sm:$0xf]
      %v618 = vld [vmem:[%s596 + $0x54] sm:$0xf]
      %v619 = vld [vmem:[%s596 + $0x58] sm:$0xf]
      %v620 = vld [vmem:[%s596 + $0x5c] sm:$0xf]
      %v621 = vld [vmem:[%s596 + $0x60] sm:$0xf]
      %v622 = vld [vmem:[%s596 + $0x64] sm:$0xf]
      %v623 = vld [vmem:[%s596 + $0x68] sm:$0xf]
      %v624 = vld [vmem:[%s596 + $0x6c] sm:$0xf]
      %v625 = vld [vmem:[%s596 + $0x70] sm:$0xf]
      %v626 = vld [vmem:[%s596 + $0x74] sm:$0xf]
      %v627 = vld [vmem:[%s596 + $0x78] sm:$0xf]
      %v628 = vld [vmem:[%s596 + $0x7c] sm:$0xf]
      %v661 = vunpack.c.l.b16 %v597
      %v662 = vunpack.c.l.b16 %v598
      %v663 = vunpack.c.l.b16 %v599
      %v664 = vunpack.c.l.b16 %v600
      %v665 = vunpack.c.l.b16 %v601
      %v666 = vunpack.c.l.b16 %v602
      %v667 = vunpack.c.l.b16 %v603
      %v668 = vunpack.c.l.b16 %v604
      %v669 = vunpack.c.l.b16 %v605
      %v670 = vunpack.c.l.b16 %v606
      %v671 = vunpack.c.l.b16 %v607
      %v672 = vunpack.c.l.b16 %v608
      %v673 = vunpack.c.l.b16 %v609
      %v674 = vunpack.c.l.b16 %v610
      %v675 = vunpack.c.l.b16 %v611
      %v676 = vunpack.c.l.b16 %v612
      %v677 = vunpack.c.l.b16 %v613
      %v678 = vunpack.c.l.b16 %v614
      %v679 = vunpack.c.l.b16 %v615
      %v680 = vunpack.c.l.b16 %v616
      %v681 = vunpack.c.l.b16 %v617
      %v682 = vunpack.c.l.b16 %v618
      %v683 = vunpack.c.l.b16 %v619
      %v684 = vunpack.c.l.b16 %v620
      %v685 = vunpack.c.l.b16 %v621
      %v686 = vunpack.c.l.b16 %v622
      %v687 = vunpack.c.l.b16 %v623
      %v688 = vunpack.c.l.b16 %v624
      %v689 = vunpack.c.l.b16 %v625
      %v690 = vunpack.c.l.b16 %v626
      %v691 = vunpack.c.l.b16 %v627
      %v692 = vunpack.c.l.b16 %v628
      %v693 = vpack.c.b16 %v662, %v661
      %v694 = vpack.c.b16 %v664, %v663
      %v695 = vpack.c.b16 %v666, %v665
      %v696 = vpack.c.b16 %v668, %v667
      %v697 = vpack.c.b16 %v670, %v669
      %v698 = vpack.c.b16 %v672, %v671
      %v699 = vpack.c.b16 %v674, %v673
      %v700 = vpack.c.b16 %v676, %v675
      %v701 = vpack.c.b16 %v678, %v677
      %v702 = vpack.c.b16 %v680, %v679
      %v703 = vpack.c.b16 %v682, %v681
      %v704 = vpack.c.b16 %v684, %v683
      %v705 = vpack.c.b16 %v686, %v685
      %v706 = vpack.c.b16 %v688, %v687
      %v707 = vpack.c.b16 %v690, %v689
      %v708 = vpack.c.b16 %v692, %v691
      %725 = vmatpush.bf16.msra.mxu0 %v700
      %726 = vmatpush.bf16.msra.mxu0 %v699
      %727 = vmatpush.bf16.msra.mxu0 %v698
      %728 = vmatpush.bf16.msra.mxu0 %v697
      %729 = vmatpush.bf16.msra.mxu0 %v696
      %730 = vmatpush.bf16.msra.mxu0 %v695
      %731 = vmatpush.bf16.msra.mxu0 %v694
      %732 = vmatpush.bf16.msra.mxu0 %v693
      %733 = vmatmul.bf16.gmra.mxu0 %v282
      %v734 = vpop.f32.mrf.mxu0
      %v735 = vadd.f32 0.0, %v734
      %v736 = vpop.f32.mrf.mxu0
      %737 = vdwg.mxu0
      %738 = vmatpush.bf16.msra.mxu0 %v708
      %739 = vmatpush.bf16.msra.mxu0 %v707
      %740 = vmatpush.bf16.msra.mxu0 %v706
      %741 = vmatpush.bf16.msra.mxu0 %v705
      %742 = vmatpush.bf16.msra.mxu0 %v704
      %743 = vmatpush.bf16.msra.mxu0 %v703
      %744 = vmatpush.bf16.msra.mxu0 %v702
      %745 = vmatpush.bf16.msra.mxu0 %v701
      %746 = vmatmul.bf16.gmra.mxu0 %v283
      %v747 = vpop.f32.mrf.mxu0
      %v748 = vadd.f32 %v735, %v747
      %v749 = vpop.f32.mrf.mxu0
      %750 = vdwg.mxu0
      %751 = vst.msk [vmem:[#allocation2 + $0x8] sm:$0xf] %vm438, %v748
      %s752 = scalar_lea.vmem %s2, 384
      %v753 = vld [vmem:[%s752] sm:$0xf]
      %v754 = vld [vmem:[%s752 + $0x4] sm:$0xf]
      %v755 = vld [vmem:[%s752 + $0x8] sm:$0xf]
      %v756 = vld [vmem:[%s752 + $0xc] sm:$0xf]
      %v757 = vld [vmem:[%s752 + $0x10] sm:$0xf]
      %v758 = vld [vmem:[%s752 + $0x14] sm:$0xf]
      %v759 = vld [vmem:[%s752 + $0x18] sm:$0xf]
      %v760 = vld [vmem:[%s752 + $0x1c] sm:$0xf]
      %v761 = vld [vmem:[%s752 + $0x20] sm:$0xf]
      %v762 = vld [vmem:[%s752 + $0x24] sm:$0xf]
      %v763 = vld [vmem:[%s752 + $0x28] sm:$0xf]
      %v764 = vld [vmem:[%s752 + $0x2c] sm:$0xf]
      %v765 = vld [vmem:[%s752 + $0x30] sm:$0xf]
      %v766 = vld [vmem:[%s752 + $0x34] sm:$0xf]
      %v767 = vld [vmem:[%s752 + $0x38] sm:$0xf]
      %v768 = vld [vmem:[%s752 + $0x3c] sm:$0xf]
      %v769 = vld [vmem:[%s752 + $0x40] sm:$0xf]
      %v770 = vld [vmem:[%s752 + $0x44] sm:$0xf]
      %v771 = vld [vmem:[%s752 + $0x48] sm:$0xf]
      %v772 = vld [vmem:[%s752 + $0x4c] sm:$0xf]
      %v773 = vld [vmem:[%s752 + $0x50] sm:$0xf]
      %v774 = vld [vmem:[%s752 + $0x54] sm:$0xf]
      %v775 = vld [vmem:[%s752 + $0x58] sm:$0xf]
      %v776 = vld [vmem:[%s752 + $0x5c] sm:$0xf]
      %v777 = vld [vmem:[%s752 + $0x60] sm:$0xf]
      %v778 = vld [vmem:[%s752 + $0x64] sm:$0xf]
      %v779 = vld [vmem:[%s752 + $0x68] sm:$0xf]
      %v780 = vld [vmem:[%s752 + $0x6c] sm:$0xf]
      %v781 = vld [vmem:[%s752 + $0x70] sm:$0xf]
      %v782 = vld [vmem:[%s752 + $0x74] sm:$0xf]
      %v783 = vld [vmem:[%s752 + $0x78] sm:$0xf]
      %v784 = vld [vmem:[%s752 + $0x7c] sm:$0xf]
      %v817 = vunpack.c.l.b16 %v753
      %v818 = vunpack.c.l.b16 %v754
      %v819 = vunpack.c.l.b16 %v755
      %v820 = vunpack.c.l.b16 %v756
      %v821 = vunpack.c.l.b16 %v757
      %v822 = vunpack.c.l.b16 %v758
      %v823 = vunpack.c.l.b16 %v759
      %v824 = vunpack.c.l.b16 %v760
      %v825 = vunpack.c.l.b16 %v761
      %v826 = vunpack.c.l.b16 %v762
      %v827 = vunpack.c.l.b16 %v763
      %v828 = vunpack.c.l.b16 %v764
      %v829 = vunpack.c.l.b16 %v765
      %v830 = vunpack.c.l.b16 %v766
      %v831 = vunpack.c.l.b16 %v767
      %v832 = vunpack.c.l.b16 %v768
      %v833 = vunpack.c.l.b16 %v769
      %v834 = vunpack.c.l.b16 %v770
      %v835 = vunpack.c.l.b16 %v771
      %v836 = vunpack.c.l.b16 %v772
      %v837 = vunpack.c.l.b16 %v773
      %v838 = vunpack.c.l.b16 %v774
      %v839 = vunpack.c.l.b16 %v775
      %v840 = vunpack.c.l.b16 %v776
      %v841 = vunpack.c.l.b16 %v777
      %v842 = vunpack.c.l.b16 %v778
      %v843 = vunpack.c.l.b16 %v779
      %v844 = vunpack.c.l.b16 %v780
      %v845 = vunpack.c.l.b16 %v781
      %v846 = vunpack.c.l.b16 %v782
      %v847 = vunpack.c.l.b16 %v783
      %v848 = vunpack.c.l.b16 %v784
      %v849 = vpack.c.b16 %v818, %v817
      %v850 = vpack.c.b16 %v820, %v819
      %v851 = vpack.c.b16 %v822, %v821
      %v852 = vpack.c.b16 %v824, %v823
      %v853 = vpack.c.b16 %v826, %v825
      %v854 = vpack.c.b16 %v828, %v827
      %v855 = vpack.c.b16 %v830, %v829
      %v856 = vpack.c.b16 %v832, %v831
      %v857 = vpack.c.b16 %v834, %v833
      %v858 = vpack.c.b16 %v836, %v835
      %v859 = vpack.c.b16 %v838, %v837
      %v860 = vpack.c.b16 %v840, %v839
      %v861 = vpack.c.b16 %v842, %v841
      %v862 = vpack.c.b16 %v844, %v843
      %v863 = vpack.c.b16 %v846, %v845
      %v864 = vpack.c.b16 %v848, %v847
      %881 = vmatpush.bf16.msra.mxu0 %v856
      %882 = vmatpush.bf16.msra.mxu0 %v855
      %883 = vmatpush.bf16.msra.mxu0 %v854
      %884 = vmatpush.bf16.msra.mxu0 %v853
      %885 = vmatpush.bf16.msra.mxu0 %v852
      %886 = vmatpush.bf16.msra.mxu0 %v851
      %887 = vmatpush.bf16.msra.mxu0 %v850
      %888 = vmatpush.bf16.msra.mxu0 %v849
      %889 = vmatmul.bf16.gmra.mxu0 %v282
      %v890 = vpop.f32.mrf.mxu0
      %v891 = vadd.f32 0.0, %v890
      %v892 = vpop.f32.mrf.mxu0
      %893 = vdwg.mxu0
      %894 = vmatpush.bf16.msra.mxu0 %v864
      %895 = vmatpush.bf16.msra.mxu0 %v863
      %896 = vmatpush.bf16.msra.mxu0 %v862
      %897 = vmatpush.bf16.msra.mxu0 %v861
      %898 = vmatpush.bf16.msra.mxu0 %v860
      %899 = vmatpush.bf16.msra.mxu0 %v859
      %900 = vmatpush.bf16.msra.mxu0 %v858
      %901 = vmatpush.bf16.msra.mxu0 %v857
      %902 = vmatmul.bf16.gmra.mxu0 %v283
      %v903 = vpop.f32.mrf.mxu0
      %v904 = vadd.f32 %v891, %v903
      %v905 = vpop.f32.mrf.mxu0
      %906 = vdwg.mxu0
      %907 = vst.msk [vmem:[#allocation2 + $0xc] sm:$0xf] %vm438, %v904
      %s908 = scalar_lea.vmem %s2, 512
      %v909 = vld [vmem:[%s908] sm:$0xf]
      %v910 = vld [vmem:[%s908 + $0x4] sm:$0xf]
      %v911 = vld [vmem:[%s908 + $0x8] sm:$0xf]
      %v912 = vld [vmem:[%s908 + $0xc] sm:$0xf]
      %v913 = vld [vmem:[%s908 + $0x10] sm:$0xf]
      %v914 = vld [vmem:[%s908 + $0x14] sm:$0xf]
      %v915 = vld [vmem:[%s908 + $0x18] sm:$0xf]
      %v916 = vld [vmem:[%s908 + $0x1c] sm:$0xf]
      %v917 = vld [vmem:[%s908 + $0x20] sm:$0xf]
      %v918 = vld [vmem:[%s908 + $0x24] sm:$0xf]
      %v919 = vld [vmem:[%s908 + $0x28] sm:$0xf]
      %v920 = vld [vmem:[%s908 + $0x2c] sm:$0xf]
      %v921 = vld [vmem:[%s908 + $0x30] sm:$0xf]
      %v922 = vld [vmem:[%s908 + $0x34] sm:$0xf]
      %v923 = vld [vmem:[%s908 + $0x38] sm:$0xf]
      %v924 = vld [vmem:[%s908 + $0x3c] sm:$0xf]
      %v925 = vld [vmem:[%s908 + $0x40] sm:$0xf]
      %v926 = vld [vmem:[%s908 + $0x44] sm:$0xf]
      %v927 = vld [vmem:[%s908 + $0x48] sm:$0xf]
      %v928 = vld [vmem:[%s908 + $0x4c] sm:$0xf]
      %v929 = vld [vmem:[%s908 + $0x50] sm:$0xf]
      %v930 = vld [vmem:[%s908 + $0x54] sm:$0xf]
      %v931 = vld [vmem:[%s908 + $0x58] sm:$0xf]
      %v932 = vld [vmem:[%s908 + $0x5c] sm:$0xf]
      %v933 = vld [vmem:[%s908 + $0x60] sm:$0xf]
      %v934 = vld [vmem:[%s908 + $0x64] sm:$0xf]
      %v935 = vld [vmem:[%s908 + $0x68] sm:$0xf]
      %v936 = vld [vmem:[%s908 + $0x6c] sm:$0xf]
      %v937 = vld [vmem:[%s908 + $0x70] sm:$0xf]
      %v938 = vld [vmem:[%s908 + $0x74] sm:$0xf]
      %v939 = vld [vmem:[%s908 + $0x78] sm:$0xf]
      %v940 = vld [vmem:[%s908 + $0x7c] sm:$0xf]
      %v973 = vunpack.c.l.b16 %v909
      %v974 = vunpack.c.l.b16 %v910
      %v975 = vunpack.c.l.b16 %v911
      %v976 = vunpack.c.l.b16 %v912
      %v977 = vunpack.c.l.b16 %v913
      %v978 = vunpack.c.l.b16 %v914
      %v979 = vunpack.c.l.b16 %v915
      %v980 = vunpack.c.l.b16 %v916
      %v981 = vunpack.c.l.b16 %v917
      %v982 = vunpack.c.l.b16 %v918
      %v983 = vunpack.c.l.b16 %v919
      %v984 = vunpack.c.l.b16 %v920
      %v985 = vunpack.c.l.b16 %v921
      %v986 = vunpack.c.l.b16 %v922
      %v987 = vunpack.c.l.b16 %v923
      %v988 = vunpack.c.l.b16 %v924
      %v989 = vunpack.c.l.b16 %v925
      %v990 = vunpack.c.l.b16 %v926
      %v991 = vunpack.c.l.b16 %v927
      %v992 = vunpack.c.l.b16 %v928
      %v993 = vunpack.c.l.b16 %v929
      %v994 = vunpack.c.l.b16 %v930
      %v995 = vunpack.c.l.b16 %v931
      %v996 = vunpack.c.l.b16 %v932
      %v997 = vunpack.c.l.b16 %v933
      %v998 = vunpack.c.l.b16 %v934
      %v999 = vunpack.c.l.b16 %v935
      %v1000 = vunpack.c.l.b16 %v936
      %v1001 = vunpack.c.l.b16 %v937
      %v1002 = vunpack.c.l.b16 %v938
      %v1003 = vunpack.c.l.b16 %v939
      %v1004 = vunpack.c.l.b16 %v940
      %v1005 = vpack.c.b16 %v974, %v973
      %v1006 = vpack.c.b16 %v976, %v975
      %v1007 = vpack.c.b16 %v978, %v977
      %v1008 = vpack.c.b16 %v980, %v979
      %v1009 = vpack.c.b16 %v982, %v981
      %v1010 = vpack.c.b16 %v984, %v983
      %v1011 = vpack.c.b16 %v986, %v985
      %v1012 = vpack.c.b16 %v988, %v987
      %v1013 = vpack.c.b16 %v990, %v989
      %v1014 = vpack.c.b16 %v992, %v991
      %v1015 = vpack.c.b16 %v994, %v993
      %v1016 = vpack.c.b16 %v996, %v995
      %v1017 = vpack.c.b16 %v998, %v997
      %v1018 = vpack.c.b16 %v1000, %v999
      %v1019 = vpack.c.b16 %v1002, %v1001
      %v1020 = vpack.c.b16 %v1004, %v1003
      %1037 = vmatpush.bf16.msra.mxu0 %v1012
      %1038 = vmatpush.bf16.msra.mxu0 %v1011
      %1039 = vmatpush.bf16.msra.mxu0 %v1010
      %1040 = vmatpush.bf16.msra.mxu0 %v1009
      %1041 = vmatpush.bf16.msra.mxu0 %v1008
      %1042 = vmatpush.bf16.msra.mxu0 %v1007
      %1043 = vmatpush.bf16.msra.mxu0 %v1006
      %1044 = vmatpush.bf16.msra.mxu0 %v1005
      %1045 = vmatmul.bf16.gmra.mxu0 %v282
      %v1046 = vpop.f32.mrf.mxu0
      %v1047 = vadd.f32 0.0, %v1046
      %v1048 = vpop.f32.mrf.mxu0
      %1049 = vdwg.mxu0
      %1050 = vmatpush.bf16.msra.mxu0 %v1020
      %1051 = vmatpush.bf16.msra.mxu0 %v1019
      %1052 = vmatpush.bf16.msra.mxu0 %v1018
      %1053 = vmatpush.bf16.msra.mxu0 %v1017
      %1054 = vmatpush.bf16.msra.mxu0 %v1016
      %1055 = vmatpush.bf16.msra.mxu0 %v1015
      %1056 = vmatpush.bf16.msra.mxu0 %v1014
      %1057 = vmatpush.bf16.msra.mxu0 %v1013
      %1058 = vmatmul.bf16.gmra.mxu0 %v283
      %v1059 = vpop.f32.mrf.mxu0
      %v1060 = vadd.f32 %v1047, %v1059
      %v1061 = vpop.f32.mrf.mxu0
      %1062 = vdwg.mxu0
      %1063 = vst.msk [vmem:[#allocation2 + $0x10] sm:$0xf] %vm438, %v1060
      %s1064 = scalar_lea.vmem %s2, 640
      %v1065 = vld [vmem:[%s1064] sm:$0xf]
      %v1066 = vld [vmem:[%s1064 + $0x4] sm:$0xf]
      %v1067 = vld [vmem:[%s1064 + $0x8] sm:$0xf]
      %v1068 = vld [vmem:[%s1064 + $0xc] sm:$0xf]
      %v1069 = vld [vmem:[%s1064 + $0x10] sm:$0xf]
      %v1070 = vld [vmem:[%s1064 + $0x14] sm:$0xf]
      %v1071 = vld [vmem:[%s1064 + $0x18] sm:$0xf]
      %v1072 = vld [vmem:[%s1064 + $0x1c] sm:$0xf]
      %v1073 = vld [vmem:[%s1064 + $0x20] sm:$0xf]
      %v1074 = vld [vmem:[%s1064 + $0x24] sm:$0xf]
      %v1075 = vld [vmem:[%s1064 + $0x28] sm:$0xf]
      %v1076 = vld [vmem:[%s1064 + $0x2c] sm:$0xf]
      %v1077 = vld [vmem:[%s1064 + $0x30] sm:$0xf]
      %v1078 = vld [vmem:[%s1064 + $0x34] sm:$0xf]
      %v1079 = vld [vmem:[%s1064 + $0x38] sm:$0xf]
      %v1080 = vld [vmem:[%s1064 + $0x3c] sm:$0xf]
      %v1081 = vld [vmem:[%s1064 + $0x40] sm:$0xf]
      %v1082 = vld [vmem:[%s1064 + $0x44] sm:$0xf]
      %v1083 = vld [vmem:[%s1064 + $0x48] sm:$0xf]
      %v1084 = vld [vmem:[%s1064 + $0x4c] sm:$0xf]
      %v1085 = vld [vmem:[%s1064 + $0x50] sm:$0xf]
      %v1086 = vld [vmem:[%s1064 + $0x54] sm:$0xf]
      %v1087 = vld [vmem:[%s1064 + $0x58] sm:$0xf]
      %v1088 = vld [vmem:[%s1064 + $0x5c] sm:$0xf]
      %v1089 = vld [vmem:[%s1064 + $0x60] sm:$0xf]
      %v1090 = vld [vmem:[%s1064 + $0x64] sm:$0xf]
      %v1091 = vld [vmem:[%s1064 + $0x68] sm:$0xf]
      %v1092 = vld [vmem:[%s1064 + $0x6c] sm:$0xf]
      %v1093 = vld [vmem:[%s1064 + $0x70] sm:$0xf]
      %v1094 = vld [vmem:[%s1064 + $0x74] sm:$0xf]
      %v1095 = vld [vmem:[%s1064 + $0x78] sm:$0xf]
      %v1096 = vld [vmem:[%s1064 + $0x7c] sm:$0xf]
      %v1129 = vunpack.c.l.b16 %v1065
      %v1130 = vunpack.c.l.b16 %v1066
      %v1131 = vunpack.c.l.b16 %v1067
      %v1132 = vunpack.c.l.b16 %v1068
      %v1133 = vunpack.c.l.b16 %v1069
      %v1134 = vunpack.c.l.b16 %v1070
      %v1135 = vunpack.c.l.b16 %v1071
      %v1136 = vunpack.c.l.b16 %v1072
      %v1137 = vunpack.c.l.b16 %v1073
      %v1138 = vunpack.c.l.b16 %v1074
      %v1139 = vunpack.c.l.b16 %v1075
      %v1140 = vunpack.c.l.b16 %v1076
      %v1141 = vunpack.c.l.b16 %v1077
      %v1142 = vunpack.c.l.b16 %v1078
      %v1143 = vunpack.c.l.b16 %v1079
      %v1144 = vunpack.c.l.b16 %v1080
      %v1145 = vunpack.c.l.b16 %v1081
      %v1146 = vunpack.c.l.b16 %v1082
      %v1147 = vunpack.c.l.b16 %v1083
      %v1148 = vunpack.c.l.b16 %v1084
      %v1149 = vunpack.c.l.b16 %v1085
      %v1150 = vunpack.c.l.b16 %v1086
      %v1151 = vunpack.c.l.b16 %v1087
      %v1152 = vunpack.c.l.b16 %v1088
      %v1153 = vunpack.c.l.b16 %v1089
      %v1154 = vunpack.c.l.b16 %v1090
      %v1155 = vunpack.c.l.b16 %v1091
      %v1156 = vunpack.c.l.b16 %v1092
      %v1157 = vunpack.c.l.b16 %v1093
      %v1158 = vunpack.c.l.b16 %v1094
      %v1159 = vunpack.c.l.b16 %v1095
      %v1160 = vunpack.c.l.b16 %v1096
      %v1161 = vpack.c.b16 %v1130, %v1129
      %v1162 = vpack.c.b16 %v1132, %v1131
      %v1163 = vpack.c.b16 %v1134, %v1133
      %v1164 = vpack.c.b16 %v1136, %v1135
      %v1165 = vpack.c.b16 %v1138, %v1137
      %v1166 = vpack.c.b16 %v1140, %v1139
      %v1167 = vpack.c.b16 %v1142, %v1141
      %v1168 = vpack.c.b16 %v1144, %v1143
      %v1169 = vpack.c.b16 %v1146, %v1145
      %v1170 = vpack.c.b16 %v1148, %v1147
      %v1171 = vpack.c.b16 %v1150, %v1149
      %v1172 = vpack.c.b16 %v1152, %v1151
      %v1173 = vpack.c.b16 %v1154, %v1153
      %v1174 = vpack.c.b16 %v1156, %v1155
      %v1175 = vpack.c.b16 %v1158, %v1157
      %v1176 = vpack.c.b16 %v1160, %v1159
      %1193 = vmatpush.bf16.msra.mxu0 %v1168
      %1194 = vmatpush.bf16.msra.mxu0 %v1167
      %1195 = vmatpush.bf16.msra.mxu0 %v1166
      %1196 = vmatpush.bf16.msra.mxu0 %v1165
      %1197 = vmatpush.bf16.msra.mxu0 %v1164
      %1198 = vmatpush.bf16.msra.mxu0 %v1163
      %1199 = vmatpush.bf16.msra.mxu0 %v1162
      %1200 = vmatpush.bf16.msra.mxu0 %v1161
      %1201 = vmatmul.bf16.gmra.mxu0 %v282
      %v1202 = vpop.f32.mrf.mxu0
      %v1203 = vadd.f32 0.0, %v1202
      %v1204 = vpop.f32.mrf.mxu0
      %1205 = vdwg.mxu0
      %1206 = vmatpush.bf16.msra.mxu0 %v1176
      %1207 = vmatpush.bf16.msra.mxu0 %v1175
      %1208 = vmatpush.bf16.msra.mxu0 %v1174
      %1209 = vmatpush.bf16.msra.mxu0 %v1173
      %1210 = vmatpush.bf16.msra.mxu0 %v1172
      %1211 = vmatpush.bf16.msra.mxu0 %v1171
      %1212 = vmatpush.bf16.msra.mxu0 %v1170
      %1213 = vmatpush.bf16.msra.mxu0 %v1169
      %1214 = vmatmul.bf16.gmra.mxu0 %v283
      %v1215 = vpop.f32.mrf.mxu0
      %v1216 = vadd.f32 %v1203, %v1215
      %v1217 = vpop.f32.mrf.mxu0
      %1218 = vdwg.mxu0
      %1219 = vst.msk [vmem:[#allocation2 + $0x14] sm:$0xf] %vm438, %v1216
      %s1220 = scalar_lea.vmem %s2, 768
      %v1221 = vld [vmem:[%s1220] sm:$0xf]
      %v1222 = vld [vmem:[%s1220 + $0x4] sm:$0xf]
      %v1223 = vld [vmem:[%s1220 + $0x8] sm:$0xf]
      %v1224 = vld [vmem:[%s1220 + $0xc] sm:$0xf]
      %v1225 = vld [vmem:[%s1220 + $0x10] sm:$0xf]
      %v1226 = vld [vmem:[%s1220 + $0x14] sm:$0xf]
      %v1227 = vld [vmem:[%s1220 + $0x18] sm:$0xf]
      %v1228 = vld [vmem:[%s1220 + $0x1c] sm:$0xf]
      %v1229 = vld [vmem:[%s1220 + $0x20] sm:$0xf]
      %v1230 = vld [vmem:[%s1220 + $0x24] sm:$0xf]
      %v1231 = vld [vmem:[%s1220 + $0x28] sm:$0xf]
      %v1232 = vld [vmem:[%s1220 + $0x2c] sm:$0xf]
      %v1233 = vld [vmem:[%s1220 + $0x30] sm:$0xf]
      %v1234 = vld [vmem:[%s1220 + $0x34] sm:$0xf]
      %v1235 = vld [vmem:[%s1220 + $0x38] sm:$0xf]
      %v1236 = vld [vmem:[%s1220 + $0x3c] sm:$0xf]
      %v1237 = vld [vmem:[%s1220 + $0x40] sm:$0xf]
      %v1238 = vld [vmem:[%s1220 + $0x44] sm:$0xf]
      %v1239 = vld [vmem:[%s1220 + $0x48] sm:$0xf]
      %v1240 = vld [vmem:[%s1220 + $0x4c] sm:$0xf]
      %v1241 = vld [vmem:[%s1220 + $0x50] sm:$0xf]
      %v1242 = vld [vmem:[%s1220 + $0x54] sm:$0xf]
      %v1243 = vld [vmem:[%s1220 + $0x58] sm:$0xf]
      %v1244 = vld [vmem:[%s1220 + $0x5c] sm:$0xf]
      %v1245 = vld [vmem:[%s1220 + $0x60] sm:$0xf]
      %v1246 = vld [vmem:[%s1220 + $0x64] sm:$0xf]
      %v1247 = vld [vmem:[%s1220 + $0x68] sm:$0xf]
      %v1248 = vld [vmem:[%s1220 + $0x6c] sm:$0xf]
      %v1249 = vld [vmem:[%s1220 + $0x70] sm:$0xf]
      %v1250 = vld [vmem:[%s1220 + $0x74] sm:$0xf]
      %v1251 = vld [vmem:[%s1220 + $0x78] sm:$0xf]
      %v1252 = vld [vmem:[%s1220 + $0x7c] sm:$0xf]
      %v1285 = vunpack.c.l.b16 %v1221
      %v1286 = vunpack.c.l.b16 %v1222
      %v1287 = vunpack.c.l.b16 %v1223
      %v1288 = vunpack.c.l.b16 %v1224
      %v1289 = vunpack.c.l.b16 %v1225
      %v1290 = vunpack.c.l.b16 %v1226
      %v1291 = vunpack.c.l.b16 %v1227
      %v1292 = vunpack.c.l.b16 %v1228
      %v1293 = vunpack.c.l.b16 %v1229
      %v1294 = vunpack.c.l.b16 %v1230
      %v1295 = vunpack.c.l.b16 %v1231
      %v1296 = vunpack.c.l.b16 %v1232
      %v1297 = vunpack.c.l.b16 %v1233
      %v1298 = vunpack.c.l.b16 %v1234
      %v1299 = vunpack.c.l.b16 %v1235
      %v1300 = vunpack.c.l.b16 %v1236
      %v1301 = vunpack.c.l.b16 %v1237
      %v1302 = vunpack.c.l.b16 %v1238
      %v1303 = vunpack.c.l.b16 %v1239
      %v1304 = vunpack.c.l.b16 %v1240
      %v1305 = vunpack.c.l.b16 %v1241
      %v1306 = vunpack.c.l.b16 %v1242
      %v1307 = vunpack.c.l.b16 %v1243
      %v1308 = vunpack.c.l.b16 %v1244
      %v1309 = vunpack.c.l.b16 %v1245
      %v1310 = vunpack.c.l.b16 %v1246
      %v1311 = vunpack.c.l.b16 %v1247
      %v1312 = vunpack.c.l.b16 %v1248
      %v1313 = vunpack.c.l.b16 %v1249
      %v1314 = vunpack.c.l.b16 %v1250
      %v1315 = vunpack.c.l.b16 %v1251
      %v1316 = vunpack.c.l.b16 %v1252
      %v1317 = vpack.c.b16 %v1286, %v1285
      %v1318 = vpack.c.b16 %v1288, %v1287
      %v1319 = vpack.c.b16 %v1290, %v1289
      %v1320 = vpack.c.b16 %v1292, %v1291
      %v1321 = vpack.c.b16 %v1294, %v1293
      %v1322 = vpack.c.b16 %v1296, %v1295
      %v1323 = vpack.c.b16 %v1298, %v1297
      %v1324 = vpack.c.b16 %v1300, %v1299
      %v1325 = vpack.c.b16 %v1302, %v1301
      %v1326 = vpack.c.b16 %v1304, %v1303
      %v1327 = vpack.c.b16 %v1306, %v1305
      %v1328 = vpack.c.b16 %v1308, %v1307
      %v1329 = vpack.c.b16 %v1310, %v1309
      %v1330 = vpack.c.b16 %v1312, %v1311
      %v1331 = vpack.c.b16 %v1314, %v1313
      %v1332 = vpack.c.b16 %v1316, %v1315
      %1349 = vmatpush.bf16.msra.mxu0 %v1324
      %1350 = vmatpush.bf16.msra.mxu0 %v1323
      %1351 = vmatpush.bf16.msra.mxu0 %v1322
      %1352 = vmatpush.bf16.msra.mxu0 %v1321
      %1353 = vmatpush.bf16.msra.mxu0 %v1320
      %1354 = vmatpush.bf16.msra.mxu0 %v1319
      %1355 = vmatpush.bf16.msra.mxu0 %v1318
      %1356 = vmatpush.bf16.msra.mxu0 %v1317
      %1357 = vmatmul.bf16.gmra.mxu0 %v282
      %v1358 = vpop.f32.mrf.mxu0
      %v1359 = vadd.f32 0.0, %v1358
      %v1360 = vpop.f32.mrf.mxu0
      %1361 = vdwg.mxu0
      %1362 = vmatpush.bf16.msra.mxu0 %v1332
      %1363 = vmatpush.bf16.msra.mxu0 %v1331
      %1364 = vmatpush.bf16.msra.mxu0 %v1330
      %1365 = vmatpush.bf16.msra.mxu0 %v1329
      %1366 = vmatpush.bf16.msra.mxu0 %v1328
      %1367 = vmatpush.bf16.msra.mxu0 %v1327
      %1368 = vmatpush.bf16.msra.mxu0 %v1326
      %1369 = vmatpush.bf16.msra.mxu0 %v1325
      %1370 = vmatmul.bf16.gmra.mxu0 %v283
      %v1371 = vpop.f32.mrf.mxu0
      %v1372 = vadd.f32 %v1359, %v1371
      %v1373 = vpop.f32.mrf.mxu0
      %1374 = vdwg.mxu0
      %1375 = vst.msk [vmem:[#allocation2 + $0x18] sm:$0xf] %vm438, %v1372
      %s1376 = scalar_lea.vmem %s2, 896
      %v1377 = vld [vmem:[%s1376] sm:$0xf]
      %v1378 = vld [vmem:[%s1376 + $0x4] sm:$0xf]
      %v1379 = vld [vmem:[%s1376 + $0x8] sm:$0xf]
      %v1380 = vld [vmem:[%s1376 + $0xc] sm:$0xf]
      %v1381 = vld [vmem:[%s1376 + $0x10] sm:$0xf]
      %v1382 = vld [vmem:[%s1376 + $0x14] sm:$0xf]
      %v1383 = vld [vmem:[%s1376 + $0x18] sm:$0xf]
      %v1384 = vld [vmem:[%s1376 + $0x1c] sm:$0xf]
      %v1385 = vld [vmem:[%s1376 + $0x20] sm:$0xf]
      %v1386 = vld [vmem:[%s1376 + $0x24] sm:$0xf]
      %v1387 = vld [vmem:[%s1376 + $0x28] sm:$0xf]
      %v1388 = vld [vmem:[%s1376 + $0x2c] sm:$0xf]
      %v1389 = vld [vmem:[%s1376 + $0x30] sm:$0xf]
      %v1390 = vld [vmem:[%s1376 + $0x34] sm:$0xf]
      %v1391 = vld [vmem:[%s1376 + $0x38] sm:$0xf]
      %v1392 = vld [vmem:[%s1376 + $0x3c] sm:$0xf]
      %v1393 = vld [vmem:[%s1376 + $0x40] sm:$0xf]
      %v1394 = vld [vmem:[%s1376 + $0x44] sm:$0xf]
      %v1395 = vld [vmem:[%s1376 + $0x48] sm:$0xf]
      %v1396 = vld [vmem:[%s1376 + $0x4c] sm:$0xf]
      %v1397 = vld [vmem:[%s1376 + $0x50] sm:$0xf]
      %v1398 = vld [vmem:[%s1376 + $0x54] sm:$0xf]
      %v1399 = vld [vmem:[%s1376 + $0x58] sm:$0xf]
      %v1400 = vld [vmem:[%s1376 + $0x5c] sm:$0xf]
      %v1401 = vld [vmem:[%s1376 + $0x60] sm:$0xf]
      %v1402 = vld [vmem:[%s1376 + $0x64] sm:$0xf]
      %v1403 = vld [vmem:[%s1376 + $0x68] sm:$0xf]
      %v1404 = vld [vmem:[%s1376 + $0x6c] sm:$0xf]
      %v1405 = vld [vmem:[%s1376 + $0x70] sm:$0xf]
      %v1406 = vld [vmem:[%s1376 + $0x74] sm:$0xf]
      %v1407 = vld [vmem:[%s1376 + $0x78] sm:$0xf]
      %v1408 = vld [vmem:[%s1376 + $0x7c] sm:$0xf]
      %v1441 = vunpack.c.l.b16 %v1377
      %v1442 = vunpack.c.l.b16 %v1378
      %v1443 = vunpack.c.l.b16 %v1379
      %v1444 = vunpack.c.l.b16 %v1380
      %v1445 = vunpack.c.l.b16 %v1381
      %v1446 = vunpack.c.l.b16 %v1382
      %v1447 = vunpack.c.l.b16 %v1383
      %v1448 = vunpack.c.l.b16 %v1384
      %v1449 = vunpack.c.l.b16 %v1385
      %v1450 = vunpack.c.l.b16 %v1386
      %v1451 = vunpack.c.l.b16 %v1387
      %v1452 = vunpack.c.l.b16 %v1388
      %v1453 = vunpack.c.l.b16 %v1389
      %v1454 = vunpack.c.l.b16 %v1390
      %v1455 = vunpack.c.l.b16 %v1391
      %v1456 = vunpack.c.l.b16 %v1392
      %v1457 = vunpack.c.l.b16 %v1393
      %v1458 = vunpack.c.l.b16 %v1394
      %v1459 = vunpack.c.l.b16 %v1395
      %v1460 = vunpack.c.l.b16 %v1396
      %v1461 = vunpack.c.l.b16 %v1397
      %v1462 = vunpack.c.l.b16 %v1398
      %v1463 = vunpack.c.l.b16 %v1399
      %v1464 = vunpack.c.l.b16 %v1400
      %v1465 = vunpack.c.l.b16 %v1401
      %v1466 = vunpack.c.l.b16 %v1402
      %v1467 = vunpack.c.l.b16 %v1403
      %v1468 = vunpack.c.l.b16 %v1404
      %v1469 = vunpack.c.l.b16 %v1405
      %v1470 = vunpack.c.l.b16 %v1406
      %v1471 = vunpack.c.l.b16 %v1407
      %v1472 = vunpack.c.l.b16 %v1408
      %v1473 = vpack.c.b16 %v1442, %v1441
      %v1474 = vpack.c.b16 %v1444, %v1443
      %v1475 = vpack.c.b16 %v1446, %v1445
      %v1476 = vpack.c.b16 %v1448, %v1447
      %v1477 = vpack.c.b16 %v1450, %v1449
      %v1478 = vpack.c.b16 %v1452, %v1451
      %v1479 = vpack.c.b16 %v1454, %v1453
      %v1480 = vpack.c.b16 %v1456, %v1455
      %v1481 = vpack.c.b16 %v1458, %v1457
      %v1482 = vpack.c.b16 %v1460, %v1459
      %v1483 = vpack.c.b16 %v1462, %v1461
      %v1484 = vpack.c.b16 %v1464, %v1463
      %v1485 = vpack.c.b16 %v1466, %v1465
      %v1486 = vpack.c.b16 %v1468, %v1467
      %v1487 = vpack.c.b16 %v1470, %v1469
      %v1488 = vpack.c.b16 %v1472, %v1471
      %1505 = vmatpush.bf16.msra.mxu0 %v1480
      %1506 = vmatpush.bf16.msra.mxu0 %v1479
      %1507 = vmatpush.bf16.msra.mxu0 %v1478
      %1508 = vmatpush.bf16.msra.mxu0 %v1477
      %1509 = vmatpush.bf16.msra.mxu0 %v1476
      %1510 = vmatpush.bf16.msra.mxu0 %v1475
      %1511 = vmatpush.bf16.msra.mxu0 %v1474
      %1512 = vmatpush.bf16.msra.mxu0 %v1473
      %1513 = vmatmul.bf16.gmra.mxu0 %v282
      %v1514 = vpop.f32.mrf.mxu0
      %v1515 = vadd.f32 0.0, %v1514
      %v1516 = vpop.f32.mrf.mxu0
      %1517 = vdwg.mxu0
      %1518 = vmatpush.bf16.msra.mxu0 %v1488
      %1519 = vmatpush.bf16.msra.mxu0 %v1487
      %1520 = vmatpush.bf16.msra.mxu0 %v1486
      %1521 = vmatpush.bf16.msra.mxu0 %v1485
      %1522 = vmatpush.bf16.msra.mxu0 %v1484
      %1523 = vmatpush.bf16.msra.mxu0 %v1483
      %1524 = vmatpush.bf16.msra.mxu0 %v1482
      %1525 = vmatpush.bf16.msra.mxu0 %v1481
      %1526 = vmatmul.bf16.gmra.mxu0 %v283
      %v1527 = vpop.f32.mrf.mxu0
      %v1528 = vadd.f32 %v1515, %v1527
      %v1529 = vpop.f32.mrf.mxu0
      %1530 = vdwg.mxu0
      %1531 = vst.msk [vmem:[#allocation2 + $0x1c] sm:$0xf] %vm438, %v1528
      %s1532 = scalar_lea.vmem %s2, 1024
      %v1533 = vld [vmem:[%s1532] sm:$0xf]
      %v1534 = vld [vmem:[%s1532 + $0x4] sm:$0xf]
      %v1535 = vld [vmem:[%s1532 + $0x8] sm:$0xf]
      %v1536 = vld [vmem:[%s1532 + $0xc] sm:$0xf]
      %v1537 = vld [vmem:[%s1532 + $0x10] sm:$0xf]
      %v1538 = vld [vmem:[%s1532 + $0x14] sm:$0xf]
      %v1539 = vld [vmem:[%s1532 + $0x18] sm:$0xf]
      %v1540 = vld [vmem:[%s1532 + $0x1c] sm:$0xf]
      %v1541 = vld [vmem:[%s1532 + $0x20] sm:$0xf]
      %v1542 = vld [vmem:[%s1532 + $0x24] sm:$0xf]
      %v1543 = vld [vmem:[%s1532 + $0x28] sm:$0xf]
      %v1544 = vld [vmem:[%s1532 + $0x2c] sm:$0xf]
      %v1545 = vld [vmem:[%s1532 + $0x30] sm:$0xf]
      %v1546 = vld [vmem:[%s1532 + $0x34] sm:$0xf]
      %v1547 = vld [vmem:[%s1532 + $0x38] sm:$0xf]
      %v1548 = vld [vmem:[%s1532 + $0x3c] sm:$0xf]
      %v1549 = vld [vmem:[%s1532 + $0x40] sm:$0xf]
      %v1550 = vld [vmem:[%s1532 + $0x44] sm:$0xf]
      %v1551 = vld [vmem:[%s1532 + $0x48] sm:$0xf]
      %v1552 = vld [vmem:[%s1532 + $0x4c] sm:$0xf]
      %v1553 = vld [vmem:[%s1532 + $0x50] sm:$0xf]
      %v1554 = vld [vmem:[%s1532 + $0x54] sm:$0xf]
      %v1555 = vld [vmem:[%s1532 + $0x58] sm:$0xf]
      %v1556 = vld [vmem:[%s1532 + $0x5c] sm:$0xf]
      %v1557 = vld [vmem:[%s1532 + $0x60] sm:$0xf]
      %v1558 = vld [vmem:[%s1532 + $0x64] sm:$0xf]
      %v1559 = vld [vmem:[%s1532 + $0x68] sm:$0xf]
      %v1560 = vld [vmem:[%s1532 + $0x6c] sm:$0xf]
      %v1561 = vld [vmem:[%s1532 + $0x70] sm:$0xf]
      %v1562 = vld [vmem:[%s1532 + $0x74] sm:$0xf]
      %v1563 = vld [vmem:[%s1532 + $0x78] sm:$0xf]
      %v1564 = vld [vmem:[%s1532 + $0x7c] sm:$0xf]
      %v1597 = vunpack.c.l.b16 %v1533
      %v1598 = vunpack.c.l.b16 %v1534
      %v1599 = vunpack.c.l.b16 %v1535
      %v1600 = vunpack.c.l.b16 %v1536
      %v1601 = vunpack.c.l.b16 %v1537
      %v1602 = vunpack.c.l.b16 %v1538
      %v1603 = vunpack.c.l.b16 %v1539
      %v1604 = vunpack.c.l.b16 %v1540
      %v1605 = vunpack.c.l.b16 %v1541
      %v1606 = vunpack.c.l.b16 %v1542
      %v1607 = vunpack.c.l.b16 %v1543
      %v1608 = vunpack.c.l.b16 %v1544
      %v1609 = vunpack.c.l.b16 %v1545
      %v1610 = vunpack.c.l.b16 %v1546
      %v1611 = vunpack.c.l.b16 %v1547
      %v1612 = vunpack.c.l.b16 %v1548
      %v1613 = vunpack.c.l.b16 %v1549
      %v1614 = vunpack.c.l.b16 %v1550
      %v1615 = vunpack.c.l.b16 %v1551
      %v1616 = vunpack.c.l.b16 %v1552
      %v1617 = vunpack.c.l.b16 %v1553
      %v1618 = vunpack.c.l.b16 %v1554
      %v1619 = vunpack.c.l.b16 %v1555
      %v1620 = vunpack.c.l.b16 %v1556
      %v1621 = vunpack.c.l.b16 %v1557
      %v1622 = vunpack.c.l.b16 %v1558
      %v1623 = vunpack.c.l.b16 %v1559
      %v1624 = vunpack.c.l.b16 %v1560
      %v1625 = vunpack.c.l.b16 %v1561
      %v1626 = vunpack.c.l.b16 %v1562
      %v1627 = vunpack.c.l.b16 %v1563
      %v1628 = vunpack.c.l.b16 %v1564
      %v1629 = vpack.c.b16 %v1598, %v1597
      %v1630 = vpack.c.b16 %v1600, %v1599
      %v1631 = vpack.c.b16 %v1602, %v1601
      %v1632 = vpack.c.b16 %v1604, %v1603
      %v1633 = vpack.c.b16 %v1606, %v1605
      %v1634 = vpack.c.b16 %v1608, %v1607
      %v1635 = vpack.c.b16 %v1610, %v1609
      %v1636 = vpack.c.b16 %v1612, %v1611
      %v1637 = vpack.c.b16 %v1614, %v1613
      %v1638 = vpack.c.b16 %v1616, %v1615
      %v1639 = vpack.c.b16 %v1618, %v1617
      %v1640 = vpack.c.b16 %v1620, %v1619
      %v1641 = vpack.c.b16 %v1622, %v1621
      %v1642 = vpack.c.b16 %v1624, %v1623
      %v1643 = vpack.c.b16 %v1626, %v1625
      %v1644 = vpack.c.b16 %v1628, %v1627
      %1661 = vmatpush.bf16.msra.mxu0 %v1636
      %1662 = vmatpush.bf16.msra.mxu0 %v1635
      %1663 = vmatpush.bf16.msra.mxu0 %v1634
      %1664 = vmatpush.bf16.msra.mxu0 %v1633
      %1665 = vmatpush.bf16.msra.mxu0 %v1632
      %1666 = vmatpush.bf16.msra.mxu0 %v1631
      %1667 = vmatpush.bf16.msra.mxu0 %v1630
      %1668 = vmatpush.bf16.msra.mxu0 %v1629
      %1669 = vmatmul.bf16.gmra.mxu0 %v282
      %v1670 = vpop.f32.mrf.mxu0
      %v1671 = vadd.f32 0.0, %v1670
      %v1672 = vpop.f32.mrf.mxu0
      %1673 = vdwg.mxu0
      %1674 = vmatpush.bf16.msra.mxu0 %v1644
      %1675 = vmatpush.bf16.msra.mxu0 %v1643
      %1676 = vmatpush.bf16.msra.mxu0 %v1642
      %1677 = vmatpush.bf16.msra.mxu0 %v1641
      %1678 = vmatpush.bf16.msra.mxu0 %v1640
      %1679 = vmatpush.bf16.msra.mxu0 %v1639
      %1680 = vmatpush.bf16.msra.mxu0 %v1638
      %1681 = vmatpush.bf16.msra.mxu0 %v1637
      %1682 = vmatmul.bf16.gmra.mxu0 %v283
      %v1683 = vpop.f32.mrf.mxu0
      %v1684 = vadd.f32 %v1671, %v1683
      %v1685 = vpop.f32.mrf.mxu0
      %1686 = vdwg.mxu0
      %1687 = vst.msk [vmem:[#allocation2 + $0x20] sm:$0xf] %vm438, %v1684
      %v1688 = vld [vmem:[#allocation2] sm:$0xff]
      %v1689 = vld [vmem:[#allocation2 + $0x8] sm:$0xff]
      %v1690 = vld [vmem:[#allocation2 + $0x10] sm:$0xff]
      %v1691 = vld [vmem:[#allocation2 + $0x18] sm:$0xff]
      %v1692 = vld [vmem:[#allocation2 + $0x20] sm:$0xf]
      %v1693 = vpack.c.bf16 %v1689, %v1688
      %v1694 = vpack.c.bf16 %v1691, %v1690
      %v1695 = vpack.c.bf16 %v1692, %v1692
      %1697 = vset.pattern.permute.xlu0 36
      %1698 = vperm.xlu0 %1697, %v236
      %v1699 = vpop.permute.xlu0 %1698
      %vm1701 = vcmask 293888
      %v1703 = vsel %vm1701, %v237, 0
      %vm1705 = vcmask 1041408
      %v1707 = vsel %vm1705, %v1695, 0
      %1709 = vmatpush.bf16.msra.mxu0 0
      %1710 = vmatpush.bf16.msra.mxu0 0
      %1711 = vmatpush.bf16.msra.mxu0 0
      %1712 = vmatpush.bf16.msra.mxu0 0
      %1713 = vmatpush.bf16.msra.mxu0 0
      %1714 = vmatpush.bf16.msra.mxu0 %v1707
      %1715 = vmatpush.bf16.msra.mxu0 %v1694
      %1716 = vmatpush.bf16.msra.mxu0 %v1693
      %1717 = vmatmul.bf16.gmra.mxu0 %v1703
      %v1718 = vpop.f32.mrf.mxu0
      %v1719 = vadd.f32 %v1699, %v1718
      %v1720 = vpop.f32.mrf.mxu0
      %1721 = vdwg.mxu0
      %v1722 = vmax.f32 %v1719, 0.0
      %v1723 = vld [vmem:[%s908] sm:$0xf]
      %v1724 = vld [vmem:[%s908 + $0x4] sm:$0xf]
      %v1725 = vld [vmem:[%s908 + $0x8] sm:$0xf]
      %v1726 = vld [vmem:[%s908 + $0xc] sm:$0xf]
      %v1727 = vld [vmem:[%s908 + $0x10] sm:$0xf]
      %v1728 = vld [vmem:[%s908 + $0x14] sm:$0xf]
      %v1729 = vld [vmem:[%s908 + $0x18] sm:$0xf]
      %v1730 = vld [vmem:[%s908 + $0x1c] sm:$0xf]
      %v1731 = vld [vmem:[%s908 + $0x20] sm:$0xf]
      %v1732 = vld [vmem:[%s908 + $0x24] sm:$0xf]
      %v1733 = vld [vmem:[%s908 + $0x28] sm:$0xf]
      %v1734 = vld [vmem:[%s908 + $0x2c] sm:$0xf]
      %v1735 = vld [vmem:[%s908 + $0x30] sm:$0xf]
      %v1736 = vld [vmem:[%s908 + $0x34] sm:$0xf]
      %v1737 = vld [vmem:[%s908 + $0x38] sm:$0xf]
      %v1738 = vld [vmem:[%s908 + $0x3c] sm:$0xf]
      %v1739 = vld [vmem:[%s908 + $0x40] sm:$0xf]
      %v1740 = vld [vmem:[%s908 + $0x44] sm:$0xf]
      %v1741 = vld [vmem:[%s908 + $0x48] sm:$0xf]
      %v1742 = vld [vmem:[%s908 + $0x4c] sm:$0xf]
      %v1743 = vld [vmem:[%s908 + $0x50] sm:$0xf]
      %v1744 = vld [vmem:[%s908 + $0x54] sm:$0xf]
      %v1745 = vld [vmem:[%s908 + $0x58] sm:$0xf]
      %v1746 = vld [vmem:[%s908 + $0x5c] sm:$0xf]
      %v1747 = vld [vmem:[%s908 + $0x60] sm:$0xf]
      %v1748 = vld [vmem:[%s908 + $0x64] sm:$0xf]
      %v1749 = vld [vmem:[%s908 + $0x68] sm:$0xf]
      %v1750 = vld [vmem:[%s908 + $0x6c] sm:$0xf]
      %v1751 = vld [vmem:[%s908 + $0x70] sm:$0xf]
      %v1752 = vld [vmem:[%s908 + $0x74] sm:$0xf]
      %v1753 = vld [vmem:[%s908 + $0x78] sm:$0xf]
      %v1754 = vld [vmem:[%s908 + $0x7c] sm:$0xf]
      %v1787 = vunpack.c.l.b16 %v1723
      %v1788 = vunpack.c.l.b16 %v1724
      %v1789 = vunpack.c.l.b16 %v1725
      %v1790 = vunpack.c.l.b16 %v1726
      %v1791 = vunpack.c.l.b16 %v1727
      %v1792 = vunpack.c.l.b16 %v1728
      %v1793 = vunpack.c.l.b16 %v1729
      %v1794 = vunpack.c.l.b16 %v1730
      %v1795 = vunpack.c.l.b16 %v1731
      %v1796 = vunpack.c.l.b16 %v1732
      %v1797 = vunpack.c.l.b16 %v1733
      %v1798 = vunpack.c.l.b16 %v1734
      %v1799 = vunpack.c.l.b16 %v1735
      %v1800 = vunpack.c.l.b16 %v1736
      %v1801 = vunpack.c.l.b16 %v1737
      %v1802 = vunpack.c.l.b16 %v1738
      %v1803 = vunpack.c.l.b16 %v1739
      %v1804 = vunpack.c.l.b16 %v1740
      %v1805 = vunpack.c.l.b16 %v1741
      %v1806 = vunpack.c.l.b16 %v1742
      %v1807 = vunpack.c.l.b16 %v1743
      %v1808 = vunpack.c.l.b16 %v1744
      %v1809 = vunpack.c.l.b16 %v1745
      %v1810 = vunpack.c.l.b16 %v1746
      %v1811 = vunpack.c.l.b16 %v1747
      %v1812 = vunpack.c.l.b16 %v1748
      %v1813 = vunpack.c.l.b16 %v1749
      %v1814 = vunpack.c.l.b16 %v1750
      %v1815 = vunpack.c.l.b16 %v1751
      %v1816 = vunpack.c.l.b16 %v1752
      %v1817 = vunpack.c.l.b16 %v1753
      %v1818 = vunpack.c.l.b16 %v1754
      %v1819 = vpack.c.b16 %v1788, %v1787
      %v1820 = vpack.c.b16 %v1790, %v1789
      %v1821 = vpack.c.b16 %v1792, %v1791
      %v1822 = vpack.c.b16 %v1794, %v1793
      %v1823 = vpack.c.b16 %v1796, %v1795
      %v1824 = vpack.c.b16 %v1798, %v1797
      %v1825 = vpack.c.b16 %v1800, %v1799
      %v1826 = vpack.c.b16 %v1802, %v1801
      %v1827 = vpack.c.b16 %v1804, %v1803
      %v1828 = vpack.c.b16 %v1806, %v1805
      %v1829 = vpack.c.b16 %v1808, %v1807
      %v1830 = vpack.c.b16 %v1810, %v1809
      %v1831 = vpack.c.b16 %v1812, %v1811
      %v1832 = vpack.c.b16 %v1814, %v1813
      %v1833 = vpack.c.b16 %v1816, %v1815
      %v1834 = vpack.c.b16 %v1818, %v1817
      %1851 = vmatpush.bf16.msra.mxu0 %v1826
      %1852 = vmatpush.bf16.msra.mxu0 %v1825
      %1853 = vmatpush.bf16.msra.mxu0 %v1824
      %1854 = vmatpush.bf16.msra.mxu0 %v1823
      %1855 = vmatpush.bf16.msra.mxu0 %v1822
      %1856 = vmatpush.bf16.msra.mxu0 %v1821
      %1857 = vmatpush.bf16.msra.mxu0 %v1820
      %1858 = vmatpush.bf16.msra.mxu0 %v1819
      %1859 = vmatmul.bf16.gmra.mxu0 %v241
      %v1860 = vpop.f32.mrf.mxu0
      %v1861 = vadd.f32 0.0, %v1860
      %v1862 = vpop.f32.mrf.mxu0
      %v1863 = vadd.f32 0.0, %v1862
      %1864 = vmatmul.bf16.gmra.mxu0 %v243
      %v1865 = vpop.f32.mrf.mxu0
      %v1866 = vadd.f32 0.0, %v1865
      %v1867 = vpop.f32.mrf.mxu0
      %v1868 = vadd.f32 0.0, %v1867
      %1869 = vdwg.mxu0
      %1870 = vmatpush.bf16.msra.mxu0 %v1834
      %1871 = vmatpush.bf16.msra.mxu0 %v1833
      %1872 = vmatpush.bf16.msra.mxu0 %v1832
      %1873 = vmatpush.bf16.msra.mxu0 %v1831
      %1874 = vmatpush.bf16.msra.mxu0 %v1830
      %1875 = vmatpush.bf16.msra.mxu0 %v1829
      %1876 = vmatpush.bf16.msra.mxu0 %v1828
      %1877 = vmatpush.bf16.msra.mxu0 %v1827
      %1878 = vmatmul.bf16.gmra.mxu0 %v242
      %v1879 = vpop.f32.mrf.mxu0
      %v1880 = vadd.f32 %v1861, %v1879
      %v1881 = vpop.f32.mrf.mxu0
      %v1882 = vadd.f32 %v1863, %v1881
      %1883 = vmatmul.bf16.gmra.mxu0 %v244
      %v1884 = vpop.f32.mrf.mxu0
      %v1885 = vadd.f32 %v1866, %v1884
      %v1886 = vpop.f32.mrf.mxu0
      %v1887 = vadd.f32 %v1868, %v1886
      %1888 = vdwg.mxu0
      %v1889 = vpack.c.bf16 %v1882, %v1880
      %v1890 = vpack.c.bf16 %v1887, %v1885
      %v1891 = vpack.c.bf16 %v1722, %v1722
      %1893 = vrot.lane.b32.xlu0 %v240, 124
      %v1894 = vpop.permute.xlu0 %1893
      %v1896 = vsel %vm250, %v1894, 0
      %1898 = vmatpush.bf16.msra.mxu0 0
      %1899 = vmatpush.bf16.msra.mxu0 0
      %1900 = vmatpush.bf16.msra.mxu0 0
      %1901 = vmatpush.bf16.msra.mxu0 0
      %1902 = vmatpush.bf16.msra.mxu0 0
      %1903 = vmatpush.bf16.msra.mxu0 0
      %1904 = vmatpush.bf16.msra.mxu0 %v1890
      %1905 = vmatpush.bf16.msra.mxu0 %v1889
      %1906 = vmatmul.bf16.gmra.mxu0 %v1896
      %v1907 = vpop.f32.mrf.mxu0
      %v1908 = vadd.f32 0.0, %v1907
      %v1909 = vpop.f32.mrf.mxu0
      %v1910 = vadd.f32 0.0, %v1909
      %1911 = vdwg.mxu0
      %vm1912 = vcmask 31744
      %v1914 = vsel %vm1912, %v240, 0
      %v1917 = vsel %vm1705, %v1891, 0
      %1919 = vmatpush.bf16.msra.mxu0 0
      %1920 = vmatpush.bf16.msra.mxu0 0
      %1921 = vmatpush.bf16.msra.mxu0 0
      %1922 = vmatpush.bf16.msra.mxu0 0
      %1923 = vmatpush.bf16.msra.mxu0 0
      %1924 = vmatpush.bf16.msra.mxu0 0
      %1925 = vmatpush.bf16.msra.mxu0 0
      %1926 = vmatpush.bf16.msra.mxu0 %v1917
      %1927 = vmatmul.bf16.gmra.mxu0 %v1914
      %v1928 = vpop.f32.mrf.mxu0
      %v1929 = vadd.f32 %v1908, %v1928
      %v1930 = vpop.f32.mrf.mxu0
      %v1931 = vadd.f32 %v1910, %v1930
      %1932 = vdwg.mxu0
      %1934 = vset.pattern.permute.xlu0 36
      %1935 = vperm.xlu0 %1934, %v238
      %v1936 = vpop.permute.xlu0 %1935
      %1939 = vset.pattern.permute.xlu0 36
      %1940 = vperm.xlu0 %1939, %v239
      %v1941 = vpop.permute.xlu0 %1940
      %v1943 = vadd.f32 %v1929, %v1936
      %v1944 = vadd.f32 %v1931, %v1941
      %v1945 = vld [vmem:[%s3] sm:$0xff]
      %v1946 = vpack.c.bf16 %v1945, %v1945
      %v1947 = vld [vmem:[%s3 + $0x8] sm:$0xff]
      %v1948 = vpack.c.bf16 %v1947, %v1947
      %v1949 = vld [vmem:[%s3 + $0x10] sm:$0xff]
      %v1950 = vld [vmem:[%s3 + $0x18] sm:$0xff]
      %v1951 = vld [vmem:[%s3 + $0x20] sm:$0xff]
      %v1952 = vld [vmem:[%s3 + $0x28] sm:$0xff]
      %v1953 = vpack.c.bf16 %v1950, %v1949
      %v1954 = vpack.c.bf16 %v1952, %v1951
      %v1955 = vpack.c.bf16 %v1944, %v1943
      %1957 = vset.pattern.permute.xlu0 72
      %1958 = vperm.xlu0 %1957, %v1945
      %v1959 = vpop.permute.xlu0 %1958
      %vm1961 = vcmask 130048
      %v1963 = vsel %vm1961, %v1946, 0
      %1965 = vmatpush.bf16.msra.mxu0 0
      %1966 = vmatpush.bf16.msra.mxu0 0
      %1967 = vmatpush.bf16.msra.mxu0 0
      %1968 = vmatpush.bf16.msra.mxu0 0
      %1969 = vmatpush.bf16.msra.mxu0 0
      %1970 = vmatpush.bf16.msra.mxu0 0
      %1971 = vmatpush.bf16.msra.mxu0 0
      %1972 = vmatpush.bf16.msra.mxu0 %v1955
      %1973 = vmatmul.bf16.gmra.mxu0 %v1963
      %v1974 = vpop.f32.mrf.mxu0
      %v1975 = vadd.f32 %v1959, %v1974
      %v1976 = vpop.f32.mrf.mxu0
      %1977 = vdwg.mxu0
      %v1978 = vmax.f32 %v1975, 0.0
      %v1979 = vpack.c.bf16 %v1978, %v1978
      %v1980 = vld [vmem:[%s4] sm:$0xf]
      %v1981 = vld [vmem:[%s4 + $0x4] sm:$0xf]
      %v1982 = vld [vmem:[%s4 + $0x8] sm:$0xf]
      %v1983 = vld [vmem:[%s4 + $0xc] sm:$0xf]
      %v1984 = vld [vmem:[%s4 + $0x10] sm:$0xf]
      %v1985 = vld [vmem:[%s4 + $0x14] sm:$0xf]
      %v1986 = vld [vmem:[%s4 + $0x18] sm:$0xf]
      %v1987 = vld [vmem:[%s4 + $0x1c] sm:$0xf]
      %v1996 = vunpack.c.l.b16 %v1980
      %v1997 = vunpack.c.l.b16 %v1981
      %v1998 = vunpack.c.l.b16 %v1982
      %v1999 = vunpack.c.l.b16 %v1983
      %v2000 = vunpack.c.l.b16 %v1984
      %v2001 = vunpack.c.l.b16 %v1985
      %v2002 = vunpack.c.l.b16 %v1986
      %v2003 = vunpack.c.l.b16 %v1987
      %v2004 = vpack.c.b16 %v1997, %v1996
      %v2005 = vpack.c.b16 %v1999, %v1998
      %v2006 = vpack.c.b16 %v2001, %v2000
      %v2007 = vpack.c.b16 %v2003, %v2002
      %vm2012 = vcmask 523264
      %v2014 = vsel %vm2012, %v1979, 0
      %2016 = vmatpush.bf16.msra.mxu0 0
      %2017 = vmatpush.bf16.msra.mxu0 0
      %2018 = vmatpush.bf16.msra.mxu0 0
      %2019 = vmatpush.bf16.msra.mxu0 0
      %2020 = vmatpush.bf16.msra.mxu0 %v2007
      %2021 = vmatpush.bf16.msra.mxu0 %v2006
      %2022 = vmatpush.bf16.msra.mxu0 %v2005
      %2023 = vmatpush.bf16.msra.mxu0 %v2004
      %2024 = vmatmul.bf16.gmra.mxu0 %v2014
      %v2025 = vpop.f32.mrf.mxu0
      %v2026 = vadd.f32 0.0, %v2025
      %v2027 = vpop.f32.mrf.mxu0
      %2028 = vdwg.mxu0
      %2029 = vst.msk [vmem:[#allocation3] sm:$0xff] %vm1961, %v2026
      %s2030 = scalar_lea.vmem %s4, 32
      %v2031 = vld [vmem:[%s2030] sm:$0xf]
      %v2032 = vld [vmem:[%s2030 + $0x4] sm:$0xf]
      %v2033 = vld [vmem:[%s2030 + $0x8] sm:$0xf]
      %v2034 = vld [vmem:[%s2030 + $0xc] sm:$0xf]
      %v2035 = vld [vmem:[%s2030 + $0x10] sm:$0xf]
      %v2036 = vld [vmem:[%s2030 + $0x14] sm:$0xf]
      %v2037 = vld [vmem:[%s2030 + $0x18] sm:$0xf]
      %v2038 = vld [vmem:[%s2030 + $0x1c] sm:$0xf]
      %v2047 = vunpack.c.l.b16 %v2031
      %v2048 = vunpack.c.l.b16 %v2032
      %v2049 = vunpack.c.l.b16 %v2033
      %v2050 = vunpack.c.l.b16 %v2034
      %v2051 = vunpack.c.l.b16 %v2035
      %v2052 = vunpack.c.l.b16 %v2036
      %v2053 = vunpack.c.l.b16 %v2037
      %v2054 = vunpack.c.l.b16 %v2038
      %v2055 = vpack.c.b16 %v2048, %v2047
      %v2056 = vpack.c.b16 %v2050, %v2049
      %v2057 = vpack.c.b16 %v2052, %v2051
      %v2058 = vpack.c.b16 %v2054, %v2053
      %2063 = vmatpush.bf16.msra.mxu0 0
      %2064 = vmatpush.bf16.msra.mxu0 0
      %2065 = vmatpush.bf16.msra.mxu0 0
      %2066 = vmatpush.bf16.msra.mxu0 0
      %2067 = vmatpush.bf16.msra.mxu0 %v2058
      %2068 = vmatpush.bf16.msra.mxu0 %v2057
      %2069 = vmatpush.bf16.msra.mxu0 %v2056
      %2070 = vmatpush.bf16.msra.mxu0 %v2055
      %2071 = vmatmul.bf16.gmra.mxu0 %v2014
      %v2072 = vpop.f32.mrf.mxu0
      %v2073 = vadd.f32 0.0, %v2072
      %v2074 = vpop.f32.mrf.mxu0
      %2075 = vdwg.mxu0
      %2076 = vst.msk [vmem:[#allocation3 + $0x8] sm:$0xff] %vm1961, %v2073
      %s2077 = scalar_lea.vmem %s4, 64
      %v2078 = vld [vmem:[%s2077] sm:$0xf]
      %v2079 = vld [vmem:[%s2077 + $0x4] sm:$0xf]
      %v2080 = vld [vmem:[%s2077 + $0x8] sm:$0xf]
      %v2081 = vld [vmem:[%s2077 + $0xc] sm:$0xf]
      %v2082 = vld [vmem:[%s2077 + $0x10] sm:$0xf]
      %v2083 = vld [vmem:[%s2077 + $0x14] sm:$0xf]
      %v2084 = vld [vmem:[%s2077 + $0x18] sm:$0xf]
      %v2085 = vld [vmem:[%s2077 + $0x1c] sm:$0xf]
      %v2094 = vunpack.c.l.b16 %v2078
      %v2095 = vunpack.c.l.b16 %v2079
      %v2096 = vunpack.c.l.b16 %v2080
      %v2097 = vunpack.c.l.b16 %v2081
      %v2098 = vunpack.c.l.b16 %v2082
      %v2099 = vunpack.c.l.b16 %v2083
      %v2100 = vunpack.c.l.b16 %v2084
      %v2101 = vunpack.c.l.b16 %v2085
      %v2102 = vpack.c.b16 %v2095, %v2094
      %v2103 = vpack.c.b16 %v2097, %v2096
      %v2104 = vpack.c.b16 %v2099, %v2098
      %v2105 = vpack.c.b16 %v2101, %v2100
      %2110 = vmatpush.bf16.msra.mxu0 0
      %2111 = vmatpush.bf16.msra.mxu0 0
      %2112 = vmatpush.bf16.msra.mxu0 0
      %2113 = vmatpush.bf16.msra.mxu0 0
      %2114 = vmatpush.bf16.msra.mxu0 %v2105
      %2115 = vmatpush.bf16.msra.mxu0 %v2104
      %2116 = vmatpush.bf16.msra.mxu0 %v2103
      %2117 = vmatpush.bf16.msra.mxu0 %v2102
      %2118 = vmatmul.bf16.gmra.mxu0 %v2014
      %v2119 = vpop.f32.mrf.mxu0
      %v2120 = vadd.f32 0.0, %v2119
      %v2121 = vpop.f32.mrf.mxu0
      %2122 = vdwg.mxu0
      %2123 = vst.msk [vmem:[#allocation3 + $0x10] sm:$0xff] %vm1961, %v2120
      %s2124 = scalar_lea.vmem %s4, 96
      %v2125 = vld [vmem:[%s2124] sm:$0xf]
      %v2126 = vld [vmem:[%s2124 + $0x4] sm:$0xf]
      %v2127 = vld [vmem:[%s2124 + $0x8] sm:$0xf]
      %v2128 = vld [vmem:[%s2124 + $0xc] sm:$0xf]
      %v2129 = vld [vmem:[%s2124 + $0x10] sm:$0xf]
      %v2130 = vld [vmem:[%s2124 + $0x14] sm:$0xf]
      %v2131 = vld [vmem:[%s2124 + $0x18] sm:$0xf]
      %v2132 = vld [vmem:[%s2124 + $0x1c] sm:$0xf]
      %v2141 = vunpack.c.l.b16 %v2125
      %v2142 = vunpack.c.l.b16 %v2126
      %v2143 = vunpack.c.l.b16 %v2127
      %v2144 = vunpack.c.l.b16 %v2128
      %v2145 = vunpack.c.l.b16 %v2129
      %v2146 = vunpack.c.l.b16 %v2130
      %v2147 = vunpack.c.l.b16 %v2131
      %v2148 = vunpack.c.l.b16 %v2132
      %v2149 = vpack.c.b16 %v2142, %v2141
      %v2150 = vpack.c.b16 %v2144, %v2143
      %v2151 = vpack.c.b16 %v2146, %v2145
      %v2152 = vpack.c.b16 %v2148, %v2147
      %2157 = vmatpush.bf16.msra.mxu0 0
      %2158 = vmatpush.bf16.msra.mxu0 0
      %2159 = vmatpush.bf16.msra.mxu0 0
      %2160 = vmatpush.bf16.msra.mxu0 0
      %2161 = vmatpush.bf16.msra.mxu0 %v2152
      %2162 = vmatpush.bf16.msra.mxu0 %v2151
      %2163 = vmatpush.bf16.msra.mxu0 %v2150
      %2164 = vmatpush.bf16.msra.mxu0 %v2149
      %2165 = vmatmul.bf16.gmra.mxu0 %v2014
      %v2166 = vpop.f32.mrf.mxu0
      %v2167 = vadd.f32 0.0, %v2166
      %v2168 = vpop.f32.mrf.mxu0
      %2169 = vdwg.mxu0
      %2170 = vst.msk [vmem:[#allocation3 + $0x18] sm:$0xff] %vm1961, %v2167
      %s2171 = scalar_lea.vmem %s4, 128
      %v2172 = vld [vmem:[%s2171] sm:$0xf]
      %v2173 = vld [vmem:[%s2171 + $0x4] sm:$0xf]
      %v2174 = vld [vmem:[%s2171 + $0x8] sm:$0xf]
      %v2175 = vld [vmem:[%s2171 + $0xc] sm:$0xf]
      %v2176 = vld [vmem:[%s2171 + $0x10] sm:$0xf]
      %v2177 = vld [vmem:[%s2171 + $0x14] sm:$0xf]
      %v2178 = vld [vmem:[%s2171 + $0x18] sm:$0xf]
      %v2179 = vld [vmem:[%s2171 + $0x1c] sm:$0xf]
      %v2188 = vunpack.c.l.b16 %v2172
      %v2189 = vunpack.c.l.b16 %v2173
      %v2190 = vunpack.c.l.b16 %v2174
      %v2191 = vunpack.c.l.b16 %v2175
      %v2192 = vunpack.c.l.b16 %v2176
      %v2193 = vunpack.c.l.b16 %v2177
      %v2194 = vunpack.c.l.b16 %v2178
      %v2195 = vunpack.c.l.b16 %v2179
      %v2196 = vpack.c.b16 %v2189, %v2188
      %v2197 = vpack.c.b16 %v2191, %v2190
      %v2198 = vpack.c.b16 %v2193, %v2192
      %v2199 = vpack.c.b16 %v2195, %v2194
      %2204 = vmatpush.bf16.msra.mxu0 0
      %2205 = vmatpush.bf16.msra.mxu0 0
      %2206 = vmatpush.bf16.msra.mxu0 0
      %2207 = vmatpush.bf16.msra.mxu0 0
      %2208 = vmatpush.bf16.msra.mxu0 %v2199
      %2209 = vmatpush.bf16.msra.mxu0 %v2198
      %2210 = vmatpush.bf16.msra.mxu0 %v2197
      %2211 = vmatpush.bf16.msra.mxu0 %v2196
      %2212 = vmatmul.bf16.gmra.mxu0 %v2014
      %v2213 = vpop.f32.mrf.mxu0
      %v2214 = vadd.f32 0.0, %v2213
      %v2215 = vpop.f32.mrf.mxu0
      %2216 = vdwg.mxu0
      %2217 = vst.msk [vmem:[#allocation3 + $0x20] sm:$0xff] %vm1961, %v2214
      %s2218 = scalar_lea.vmem %s4, 160
      %v2219 = vld [vmem:[%s2218] sm:$0xf]
      %v2220 = vld [vmem:[%s2218 + $0x4] sm:$0xf]
      %v2221 = vld [vmem:[%s2218 + $0x8] sm:$0xf]
      %v2222 = vld [vmem:[%s2218 + $0xc] sm:$0xf]
      %v2223 = vld [vmem:[%s2218 + $0x10] sm:$0xf]
      %v2224 = vld [vmem:[%s2218 + $0x14] sm:$0xf]
      %v2225 = vld [vmem:[%s2218 + $0x18] sm:$0xf]
      %v2226 = vld [vmem:[%s2218 + $0x1c] sm:$0xf]
      %v2235 = vunpack.c.l.b16 %v2219
      %v2236 = vunpack.c.l.b16 %v2220
      %v2237 = vunpack.c.l.b16 %v2221
      %v2238 = vunpack.c.l.b16 %v2222
      %v2239 = vunpack.c.l.b16 %v2223
      %v2240 = vunpack.c.l.b16 %v2224
      %v2241 = vunpack.c.l.b16 %v2225
      %v2242 = vunpack.c.l.b16 %v2226
      %v2243 = vpack.c.b16 %v2236, %v2235
      %v2244 = vpack.c.b16 %v2238, %v2237
      %v2245 = vpack.c.b16 %v2240, %v2239
      %v2246 = vpack.c.b16 %v2242, %v2241
      %2251 = vmatpush.bf16.msra.mxu0 0
      %2252 = vmatpush.bf16.msra.mxu0 0
      %2253 = vmatpush.bf16.msra.mxu0 0
      %2254 = vmatpush.bf16.msra.mxu0 0
      %2255 = vmatpush.bf16.msra.mxu0 %v2246
      %2256 = vmatpush.bf16.msra.mxu0 %v2245
      %2257 = vmatpush.bf16.msra.mxu0 %v2244
      %2258 = vmatpush.bf16.msra.mxu0 %v2243
      %2259 = vmatmul.bf16.gmra.mxu0 %v2014
      %v2260 = vpop.f32.mrf.mxu0
      %v2261 = vadd.f32 0.0, %v2260
      %v2262 = vpop.f32.mrf.mxu0
      %2263 = vdwg.mxu0
      %2264 = vst.msk [vmem:[#allocation3 + $0x28] sm:$0xff] %vm1961, %v2261
      %s2265 = scalar_lea.vmem %s4, 192
      %v2266 = vld [vmem:[%s2265] sm:$0xf]
      %v2267 = vld [vmem:[%s2265 + $0x4] sm:$0xf]
      %v2268 = vld [vmem:[%s2265 + $0x8] sm:$0xf]
      %v2269 = vld [vmem:[%s2265 + $0xc] sm:$0xf]
      %v2270 = vld [vmem:[%s2265 + $0x10] sm:$0xf]
      %v2271 = vld [vmem:[%s2265 + $0x14] sm:$0xf]
      %v2272 = vld [vmem:[%s2265 + $0x18] sm:$0xf]
      %v2273 = vld [vmem:[%s2265 + $0x1c] sm:$0xf]
      %v2282 = vunpack.c.l.b16 %v2266
      %v2283 = vunpack.c.l.b16 %v2267
      %v2284 = vunpack.c.l.b16 %v2268
      %v2285 = vunpack.c.l.b16 %v2269
      %v2286 = vunpack.c.l.b16 %v2270
      %v2287 = vunpack.c.l.b16 %v2271
      %v2288 = vunpack.c.l.b16 %v2272
      %v2289 = vunpack.c.l.b16 %v2273
      %v2290 = vpack.c.b16 %v2283, %v2282
      %v2291 = vpack.c.b16 %v2285, %v2284
      %v2292 = vpack.c.b16 %v2287, %v2286
      %v2293 = vpack.c.b16 %v2289, %v2288
      %2298 = vmatpush.bf16.msra.mxu0 0
      %2299 = vmatpush.bf16.msra.mxu0 0
      %2300 = vmatpush.bf16.msra.mxu0 0
      %2301 = vmatpush.bf16.msra.mxu0 0
      %2302 = vmatpush.bf16.msra.mxu0 %v2293
      %2303 = vmatpush.bf16.msra.mxu0 %v2292
      %2304 = vmatpush.bf16.msra.mxu0 %v2291
      %2305 = vmatpush.bf16.msra.mxu0 %v2290
      %2306 = vmatmul.bf16.gmra.mxu0 %v2014
      %v2307 = vpop.f32.mrf.mxu0
      %v2308 = vadd.f32 0.0, %v2307
      %v2309 = vpop.f32.mrf.mxu0
      %2310 = vdwg.mxu0
      %2311 = vst.msk [vmem:[#allocation3 + $0x30] sm:$0xff] %vm1961, %v2308
      %s2312 = scalar_lea.vmem %s4, 224
      %v2313 = vld [vmem:[%s2312] sm:$0xf]
      %v2314 = vld [vmem:[%s2312 + $0x4] sm:$0xf]
      %v2315 = vld [vmem:[%s2312 + $0x8] sm:$0xf]
      %v2316 = vld [vmem:[%s2312 + $0xc] sm:$0xf]
      %v2317 = vld [vmem:[%s2312 + $0x10] sm:$0xf]
      %v2318 = vld [vmem:[%s2312 + $0x14] sm:$0xf]
      %v2319 = vld [vmem:[%s2312 + $0x18] sm:$0xf]
      %v2320 = vld [vmem:[%s2312 + $0x1c] sm:$0xf]
      %v2329 = vunpack.c.l.b16 %v2313
      %v2330 = vunpack.c.l.b16 %v2314
      %v2331 = vunpack.c.l.b16 %v2315
      %v2332 = vunpack.c.l.b16 %v2316
      %v2333 = vunpack.c.l.b16 %v2317
      %v2334 = vunpack.c.l.b16 %v2318
      %v2335 = vunpack.c.l.b16 %v2319
      %v2336 = vunpack.c.l.b16 %v2320
      %v2337 = vpack.c.b16 %v2330, %v2329
      %v2338 = vpack.c.b16 %v2332, %v2331
      %v2339 = vpack.c.b16 %v2334, %v2333
      %v2340 = vpack.c.b16 %v2336, %v2335
      %2345 = vmatpush.bf16.msra.mxu0 0
      %2346 = vmatpush.bf16.msra.mxu0 0
      %2347 = vmatpush.bf16.msra.mxu0 0
      %2348 = vmatpush.bf16.msra.mxu0 0
      %2349 = vmatpush.bf16.msra.mxu0 %v2340
      %2350 = vmatpush.bf16.msra.mxu0 %v2339
      %2351 = vmatpush.bf16.msra.mxu0 %v2338
      %2352 = vmatpush.bf16.msra.mxu0 %v2337
      %2353 = vmatmul.bf16.gmra.mxu0 %v2014
      %v2354 = vpop.f32.mrf.mxu0
      %v2355 = vadd.f32 0.0, %v2354
      %v2356 = vpop.f32.mrf.mxu0
      %2357 = vdwg.mxu0
      %2358 = vst.msk [vmem:[#allocation3 + $0x38] sm:$0xff] %vm1961, %v2355
      %s2359 = scalar_lea.vmem %s4, 256
      %v2360 = vld [vmem:[%s2359] sm:$0xf]
      %v2361 = vld [vmem:[%s2359 + $0x4] sm:$0xf]
      %v2362 = vld [vmem:[%s2359 + $0x8] sm:$0xf]
      %v2363 = vld [vmem:[%s2359 + $0xc] sm:$0xf]
      %v2364 = vld [vmem:[%s2359 + $0x10] sm:$0xf]
      %v2365 = vld [vmem:[%s2359 + $0x14] sm:$0xf]
      %v2366 = vld [vmem:[%s2359 + $0x18] sm:$0xf]
      %v2367 = vld [vmem:[%s2359 + $0x1c] sm:$0xf]
      %v2376 = vunpack.c.l.b16 %v2360
      %v2377 = vunpack.c.l.b16 %v2361
      %v2378 = vunpack.c.l.b16 %v2362
      %v2379 = vunpack.c.l.b16 %v2363
      %v2380 = vunpack.c.l.b16 %v2364
      %v2381 = vunpack.c.l.b16 %v2365
      %v2382 = vunpack.c.l.b16 %v2366
      %v2383 = vunpack.c.l.b16 %v2367
      %v2384 = vpack.c.b16 %v2377, %v2376
      %v2385 = vpack.c.b16 %v2379, %v2378
      %v2386 = vpack.c.b16 %v2381, %v2380
      %v2387 = vpack.c.b16 %v2383, %v2382
      %2392 = vmatpush.bf16.msra.mxu0 0
      %2393 = vmatpush.bf16.msra.mxu0 0
      %2394 = vmatpush.bf16.msra.mxu0 0
      %2395 = vmatpush.bf16.msra.mxu0 0
      %2396 = vmatpush.bf16.msra.mxu0 %v2387
      %2397 = vmatpush.bf16.msra.mxu0 %v2386
      %2398 = vmatpush.bf16.msra.mxu0 %v2385
      %2399 = vmatpush.bf16.msra.mxu0 %v2384
      %2400 = vmatmul.bf16.gmra.mxu0 %v2014
      %v2401 = vpop.f32.mrf.mxu0
      %v2402 = vadd.f32 0.0, %v2401
      %v2403 = vpop.f32.mrf.mxu0
      %2404 = vdwg.mxu0
      %2405 = vst.msk [vmem:[#allocation3 + $0x40] sm:$0xff] %vm1961, %v2402
      %v2406 = vld [vmem:[#allocation3] sm:$0xff]
      %v2407 = vld [vmem:[#allocation3 + $0x8] sm:$0xff]
      %v2408 = vld [vmem:[#allocation3 + $0x10] sm:$0xff]
      %v2409 = vld [vmem:[#allocation3 + $0x18] sm:$0xff]
      %v2410 = vld [vmem:[#allocation3 + $0x20] sm:$0xff]
      %v2411 = vld [vmem:[#allocation3 + $0x28] sm:$0xff]
      %v2412 = vld [vmem:[#allocation3 + $0x30] sm:$0xff]
      %v2413 = vld [vmem:[#allocation3 + $0x38] sm:$0xff]
      %v2414 = vld [vmem:[#allocation3 + $0x40] sm:$0xff]
      %v2415 = vpack.c.bf16 %v2407, %v2406
      %v2416 = vpack.c.bf16 %v2409, %v2408
      %v2417 = vpack.c.bf16 %v2411, %v2410
      %v2418 = vpack.c.bf16 %v2413, %v2412
      %v2419 = vpack.c.bf16 %v2414, %v2414
      %2421 = vset.pattern.permute.xlu0 72
      %2422 = vperm.xlu0 %2421, %v1947
      %v2423 = vpop.permute.xlu0 %2422
      %vm2425 = vcmask 588800
      %v2427 = vsel %vm2425, %v1948, 0
      %vm2429 = vcmask 1043456
      %v2431 = vsel %vm2429, %v2419, 0
      %2433 = vmatpush.bf16.msra.mxu0 0
      %2434 = vmatpush.bf16.msra.mxu0 0
      %2435 = vmatpush.bf16.msra.mxu0 0
      %2436 = vmatpush.bf16.msra.mxu0 %v2431
      %2437 = vmatpush.bf16.msra.mxu0 %v2418
      %2438 = vmatpush.bf16.msra.mxu0 %v2417
      %2439 = vmatpush.bf16.msra.mxu0 %v2416
      %2440 = vmatpush.bf16.msra.mxu0 %v2415
      %2441 = vmatmul.bf16.gmra.mxu0 %v2427
      %v2442 = vpop.f32.mrf.mxu0
      %v2443 = vadd.f32 %v2423, %v2442
      %v2444 = vpop.f32.mrf.mxu0
      %2445 = vdwg.mxu0
      %v2446 = vmax.f32 %v2443, 0.0
      %v2447 = vld [vmem:[%s2171] sm:$0xf]
      %v2448 = vld [vmem:[%s2171 + $0x4] sm:$0xf]
      %v2449 = vld [vmem:[%s2171 + $0x8] sm:$0xf]
      %v2450 = vld [vmem:[%s2171 + $0xc] sm:$0xf]
      %v2451 = vld [vmem:[%s2171 + $0x10] sm:$0xf]
      %v2452 = vld [vmem:[%s2171 + $0x14] sm:$0xf]
      %v2453 = vld [vmem:[%s2171 + $0x18] sm:$0xf]
      %v2454 = vld [vmem:[%s2171 + $0x1c] sm:$0xf]
      %v2463 = vunpack.c.l.b16 %v2447
      %v2464 = vunpack.c.l.b16 %v2448
      %v2465 = vunpack.c.l.b16 %v2449
      %v2466 = vunpack.c.l.b16 %v2450
      %v2467 = vunpack.c.l.b16 %v2451
      %v2468 = vunpack.c.l.b16 %v2452
      %v2469 = vunpack.c.l.b16 %v2453
      %v2470 = vunpack.c.l.b16 %v2454
      %v2471 = vpack.c.b16 %v2464, %v2463
      %v2472 = vpack.c.b16 %v2466, %v2465
      %v2473 = vpack.c.b16 %v2468, %v2467
      %v2474 = vpack.c.b16 %v2470, %v2469
      %v2480 = vsel %vm2012, %v1955, 0
      %2482 = vmatpush.bf16.msra.mxu0 0
      %2483 = vmatpush.bf16.msra.mxu0 0
      %2484 = vmatpush.bf16.msra.mxu0 0
      %2485 = vmatpush.bf16.msra.mxu0 0
      %2486 = vmatpush.bf16.msra.mxu0 %v2474
      %2487 = vmatpush.bf16.msra.mxu0 %v2473
      %2488 = vmatpush.bf16.msra.mxu0 %v2472
      %2489 = vmatpush.bf16.msra.mxu0 %v2471
      %2490 = vmatmul.bf16.gmra.mxu0 %v2480
      %v2491 = vpop.f32.mrf.mxu0
      %v2492 = vadd.f32 0.0, %v2491
      %v2493 = vpop.f32.mrf.mxu0
      %v2494 = vadd.f32 0.0, %v2493
      %2495 = vdwg.mxu0
      %v2496 = vpack.c.bf16 %v2494, %v2492
      %v2497 = vpack.c.bf16 %v2446, %v2446
      %2500 = vrot.lane.b32.xlu0 %v1953, 120
      %v2501 = vpop.permute.xlu0 %2500
      %2502 = vrot.lane.b32.xlu0 %v1954, 120
      %v2503 = vpop.permute.xlu0 %2502
      %v2505 = vsel %vm1961, %v2501, 0
      %v2508 = vsel %vm1961, %v2503, 0
      %2510 = vmatpush.bf16.msra.mxu0 0
      %2511 = vmatpush.bf16.msra.mxu0 0
      %2512 = vmatpush.bf16.msra.mxu0 0
      %2513 = vmatpush.bf16.msra.mxu0 0
      %2514 = vmatpush.bf16.msra.mxu0 0
      %2515 = vmatpush.bf16.msra.mxu0 0
      %2516 = vmatpush.bf16.msra.mxu0 0
      %2517 = vmatpush.bf16.msra.mxu0 %v2496
      %2518 = vmatmul.bf16.gmra.mxu0 %v2505
      %v2519 = vpop.f32.mrf.mxu0
      %v2520 = vadd.f32 0.0, %v2519
      %v2521 = vpop.f32.mrf.mxu0
      %v2522 = vadd.f32 0.0, %v2521
      %2523 = vmatmul.bf16.gmra.mxu0 %v2508
      %v2524 = vpop.f32.mrf.mxu0
      %v2525 = vadd.f32 0.0, %v2524
      %v2526 = vpop.f32.mrf.mxu0
      %v2527 = vadd.f32 0.0, %v2526
      %2528 = vdwg.mxu0
      %vm2529 = vcmask 64512
      %v2531 = vsel %vm2529, %v1953, 0
      %v2534 = vsel %vm2529, %v1954, 0
      %v2537 = vsel %vm2429, %v2497, 0
      %2539 = vmatpush.bf16.msra.mxu0 0
      %2540 = vmatpush.bf16.msra.mxu0 0
      %2541 = vmatpush.bf16.msra.mxu0 0
      %2542 = vmatpush.bf16.msra.mxu0 0
      %2543 = vmatpush.bf16.msra.mxu0 0
      %2544 = vmatpush.bf16.msra.mxu0 0
      %2545 = vmatpush.bf16.msra.mxu0 0
      %2546 = vmatpush.bf16.msra.mxu0 %v2537
      %2547 = vmatmul.bf16.gmra.mxu0 %v2531
      %v2548 = vpop.f32.mrf.mxu0
      %v2549 = vadd.f32 %v2520, %v2548
      %v2550 = vpop.f32.mrf.mxu0
      %v2551 = vadd.f32 %v2522, %v2550
      %2552 = vmatmul.bf16.gmra.mxu0 %v2534
      %v2553 = vpop.f32.mrf.mxu0
      %v2554 = vadd.f32 %v2525, %v2553
      %v2555 = vpop.f32.mrf.mxu0
      %v2556 = vadd.f32 %v2527, %v2555
      %2557 = vdwg.mxu0
      %2559 = vset.pattern.permute.xlu0 72
      %2560 = vperm.xlu0 %2559, %v1949
      %v2561 = vpop.permute.xlu0 %2560
      %2564 = vset.pattern.permute.xlu0 72
      %2565 = vperm.xlu0 %2564, %v1950
      %v2566 = vpop.permute.xlu0 %2565
      %2569 = vset.pattern.permute.xlu0 72
      %2570 = vperm.xlu0 %2569, %v1951
      %v2571 = vpop.permute.xlu0 %2570
      %2574 = vset.pattern.permute.xlu0 72
      %2575 = vperm.xlu0 %2574, %v1952
      %v2576 = vpop.permute.xlu0 %2575
      %v2578 = vadd.f32 %v2549, %v2561
      %v2579 = vadd.f32 %v2551, %v2566
      %v2580 = vadd.f32 %v2554, %v2571
      %v2581 = vadd.f32 %v2556, %v2576
      %2582 = vst.msk [vmem:[%s224] sm:$0xff] %vm1961, %v2578
      %2583 = vst.msk [vmem:[%s224 + $0x8] sm:$0xff] %vm1961, %v2579
      %2584 = vst.msk [vmem:[%s224 + $0x10] sm:$0xff] %vm1961, %v2580
      %2585 = vst.msk [vmem:[%s224 + $0x18] sm:$0xff] %vm1961, %v2581
      %p2586 = scmp.lt.s32.totalorder %s16, 1
      %s2587 = scalar_select %p2586, %s16, 1
      %s2588 = smul.addr %s2587, 4
      %s2589 = smul.addr %s2588, 8
      %s2590 = scalar_lea.vmem %s5, %s2589
      // Predicated region
      $region41: #{tpu_custom_call.1} parent=39 // pred_check
        %p2591 = pneg %p144
      $region42: #{tpu_custom_call.1} parent=39 // pred_check_branch
        %2593 = sbr.rel (%p2591) target = $region44
      $region43: #{tpu_custom_call.1} parent=39 // pred_region
        _
      $region44: #{tpu_custom_call.1} parent=39 // pred_fallthru
        _
    $region40: #{tpu_custom_call.1} parent=5 // pred_fallthru
      _
    %p2594 = scmp.le.s32.totalorder 2, %s11
    // Predicated region
    $region45: #{tpu_custom_call.1} parent=5 // pred_check
      %p2595 = pneg %p2594
    $region46: #{tpu_custom_call.1} parent=5 // pred_check_branch
      %2597 = sbr.rel (%p2595) target = $region48
    $region47: #{tpu_custom_call.1} parent=5 // pred_region
      %s2598 = ssub.s32 %s11, 2
      // Predicated region
      $region49: #{tpu_custom_call.1} parent=47 // pred_check
        %p2599 = pneg %p150
      $region50: #{tpu_custom_call.1} parent=47 // pred_check_branch
        %2601 = sbr.rel (%p2599) target = $region52
      $region51: #{tpu_custom_call.1} parent=47 // pred_region
        %p2602 = scmp.lt.s32.totalorder %s17, 1
        %s2603 = scalar_select %p2602, %s17, 1
        %s2604 = smul.addr %s2603, 4
        %s2605 = smul.addr %s2604, 8
        %s2606 = scalar_lea.vmem %s5, %s2605
      $region52: #{tpu_custom_call.1} parent=47 // pred_fallthru
        _
    $region48: #{tpu_custom_call.1} parent=5 // pred_fallthru
      _
  $region6: #{tpu_custom_call.1} parent=0 // loop_footer
    %s15 = sadd.s32 1, %s11
  $region7: #{tpu_custom_call.1} parent=0 // loop_footer_branch
    %10 = sbr.rel target = $region3
  $region8: #{tpu_custom_call.1} parent=0 // loop_exit
    _

</llo_original>
